<compile_context>
chip_gen: v6e
topology: v6e:2x2x1
jax: 0.10.0
libtpu: 0.0.40
codegen_flags: <defaults>
</compile_context>

<pallas_src>
import functools
import math

import jax
import jax.numpy as jnp
from jax.experimental import pallas as pl
from jax.experimental.pallas import tpu as pltpu


def _round_up(n, m):
    return ((n + m - 1) // m) * m


def _pick_tile(full, block, quantum):
    """Largest tile (multiple of `quantum`, capped near `block`) minimizing padding."""
    cap = min(block, _round_up(full, quantum))
    cap = max(quantum, (cap // quantum) * quantum)
    best_t, best_pad = quantum, None
    for t in range(cap, quantum - 1, -quantum):
        padded = _round_up(full, t)
        if best_pad is None or padded < best_pad:
            best_t, best_pad = t, padded
    return best_t, best_pad


def _biaffine_kernel(x_ref, w_ref, y_ref, o_ref, xw_ref, bcol_ref, *,
                     nIn, G, tx, ty, biasX, biasY):
    """One (nOut-group, batch, X-tile, Y-tile) grid step.

    x_ref   : (tx, nIn)      x tile (padded rows are zero)
    w_ref   : (G, I, J)      weight group, I = nIn+biasX, J = nIn+biasY
    y_ref   : (nIn, ty)      pre-transposed y tile (lane-dense in Y)
    o_ref   : (G, tx, ty)    output tile
    xw_ref  : (G*tx, nIn)    scratch: core of [x,1] @ W[o], reused across Y tiles
    bcol_ref: (G*tx, 1)      scratch: bias-Y column of [x,1] @ W[o] (f32)
    """
    yi = pl.program_id(3)

    # Cold path: recompute xW once per (nOut-group, batch, X-tile). The Y-tile axis is
    # the innermost ("arbitrary") grid axis, so the scratches stay valid across Y tiles.
    @pl.when(yi == 0)
    def _():
        x = x_ref[...]
        for g in range(G):                                   # static unroll, small G
            wg = w_ref[g]                                    # (I, J)
            w_rows = wg[0:nIn, :] if biasX else wg           # (nIn, J)
            xw = jnp.dot(x, w_rows, preferred_element_type=jnp.float32)  # (tx, J) f32
            if biasX:
                xw = xw + wg[nIn:nIn + 1, :].astype(jnp.float32)         # bias-X row
            if biasY:
                # Lane split of the odd J = nIn+1 width happens only here (cold path).
                xw_ref[pl.ds(g * tx, tx), :] = xw[:, 0:nIn].astype(xw_ref.dtype)
                bcol_ref[pl.ds(g * tx, tx), :] = xw[:, nIn:nIn + 1]
            else:
                xw_ref[pl.ds(g * tx, tx), :] = xw.astype(xw_ref.dtype)

    # Hot path: one standard-orientation MXU GEMM for all G channels, slice-free.
    s = jnp.dot(xw_ref[...], y_ref[...], preferred_element_type=jnp.float32)  # (G*tx, ty)
    if biasY:
        s = s + bcol_ref[...]                                # rank-1 bias-Y correction
    o_ref[...] = s.reshape(G, tx, ty).astype(o_ref.dtype)


def biaffine_forward(x, y, weight, biasX=True, biasY=True, *,
                     block_x=256, block_y=512,
                     compute_dtype=None, out_dtype=None,
                     max_channel_group=8):
    """x: (B, X, nIn), y: (B, Y, nIn), weight: (nOut, nIn+biasX, nIn+biasY).

    compute_dtype / out_dtype default to x.dtype. Passing jnp.bfloat16 halves the
    dominant output-writeback stream and uses the bf16 MXU path (f32 accumulation,
    but the first-GEMM result is truncated to bf16 in the xW scratch).
    """
    B, X, nIn = x.shape
    By, Y, nIn_y = y.shape
    assert By == B and nIn_y == nIn
    nOut, I, J = weight.shape
    assert I == nIn + int(biasX) and J == nIn + int(biasY)

    out_dtype = jnp.dtype(x.dtype if out_dtype is None else out_dtype)
    cdt = jnp.dtype(x.dtype if compute_dtype is None else compute_dtype)
    cb, ob = cdt.itemsize, out_dtype.itemsize

    # ---- generation-aware VMEM budget (v7x has 64 MiB vs 128 MiB on v5e/v6e) ----
    try:
        info = pltpu.get_tpu_info()
        vmem_cap = int(getattr(info, "vmem_capacity_bytes", 64 * 1024 * 1024))
    except Exception:
        vmem_cap = 64 * 1024 * 1024
    budget = max(24 * 1024 * 1024, min(vmem_cap - 16 * 1024 * 1024, 96 * 1024 * 1024))

    # ---- tile / channel-group selection ----
    tx, Xp = _pick_tile(X, block_x, 8)        # sublane-aligned X tile
    ty, Yp = _pick_tile(Y, block_y, 128)      # lane-dense Y tile (128-multiple)

    divisors = [d for d in range(min(nOut, max_channel_group), 0, -1) if nOut % d == 0]
    G = divisors[0]

    def vmem_need(G, tx, ty):
        rl = lambda n: _round_up(n, 128)
        rs = lambda n: _round_up(n, 8)
        return (2 * rs(tx) * rl(nIn) * cb            # x block (double-buffered)
                + 2 * G * rs(I) * rl(J) * cb         # weight group block
                + 2 * rs(nIn) * rl(ty) * cb          # y block
                + 2 * G * rs(tx) * rl(ty) * ob       # output block
                + rs(G * tx) * rl(nIn) * cb          # xW core scratch
                + rs(G * tx) * 128 * 4)              # bias-column scratch (lane-padded)

    while vmem_need(G, tx, ty) > budget:
        if ty > 128:
            ty = max(128, (ty // 2) // 128 * 128)
            Yp = _round_up(Y, ty)
        elif any(d < G for d in divisors):
            G = max(d for d in divisors if d < G)
        elif tx > 8:
            tx = max(8, (tx // 2) // 8 * 8)
            Xp = _round_up(X, tx)
        else:
            break

    # v7x megacore: make sure the parallel iteration space has >= 2 steps by splitting
    # the X-tile axis (without growing Xp) rather than leaving one TensorCore idle.
    if (nOut // G) * B * (Xp // tx) < 2 and tx >= 16:
        for cand in range((tx // 2) // 8 * 8, 7, -8):
            if Xp % cand == 0:
                tx = cand
                break

    grid = (nOut // G, B, Xp // tx, Yp // ty)

    # ---- operands: pad to tile-aligned shapes; y pre-transposed to (B, nIn, Yp) ----
    xq = x.astype(cdt)
    if Xp != X:
        xq = jnp.pad(xq, ((0, 0), (0, Xp - X), (0, 0)))
    yt = jnp.swapaxes(y.astype(cdt), 1, 2)           # (B, nIn, Y), lane-dense in Y
    if Yp != Y:
        yt = jnp.pad(yt, ((0, 0), (0, 0), (0, Yp - Y)))
    wq = weight.astype(cdt)

    kernel = functools.partial(_biaffine_kernel, nIn=nIn, G=G, tx=tx, ty=ty,
                               biasX=bool(biasX), biasY=bool(biasY))

    # Honest HBM traffic estimate (reflects refetch pattern) + FLOPs on padded extents.
    flops = 2 * nOut * B * Xp * nIn * (J + Yp)
    bytes_accessed = int(
        B * Xp * nIn * cb * (nOut // G)                       # x, refetched per channel group
        + nOut * I * J * cb                                   # weights, fetched once
        + B * nIn * Yp * cb * (nOut // G) * (Xp // tx)        # y, refetched per (group, x-tile)
        + B * nOut * Xp * Yp * ob)                            # output writeback

    out = pl.pallas_call(
        kernel,
        out_shape=jax.ShapeDtypeStruct((B, nOut, Xp, Yp), out_dtype),
        grid_spec=pltpu.PrefetchScalarGridSpec(
            num_scalar_prefetch=0,
            grid=grid,
            in_specs=[
                # x tile: constant across yi, re-fetched only when (b, xi, og) changes
                pl.BlockSpec((None, tx, nIn), lambda og, b, xi, yi: (b, xi, 0)),
                # weight group: og is the outermost grid axis -> DMA'd once per group
                pl.BlockSpec((G, I, J), lambda og, b, xi, yi: (og, 0, 0)),
                # pre-transposed y tile, lane-dense in Y
                pl.BlockSpec((None, nIn, ty), lambda og, b, xi, yi: (b, 0, yi)),
            ],
            out_specs=pl.BlockSpec((None, G, tx, ty),
                                   lambda og, b, xi, yi: (b, og, xi, yi)),
            scratch_shapes=[pltpu.VMEM((G * tx, nIn), cdt),
                            pltpu.VMEM((G * tx, 1), jnp.float32)],
        ),
        compiler_params=pltpu.CompilerParams(
            dimension_semantics=("parallel", "parallel", "parallel", "arbitrary"),
            vmem_limit_bytes=int(budget),
        ),
        cost_estimate=pl.CostEstimate(
            flops=flops, transcendentals=0, bytes_accessed=bytes_accessed),
    )(xq, wq, yt)

    out = out[:, :, :X, :Y]            # drop lane/sublane padding
    if nOut == 1:                      # torch's s.squeeze(1): only removed when nOut == 1
        out = out[:, 0]
    return out


def init_biaffine_weight(key, nIn, nOut=1, biasX=True, biasY=True):
    """Deterministic xavier_uniform_ equivalent for weight (nOut, nIn+biasX, nIn+biasY)."""
    I = nIn + int(biasX)
    J = nIn + int(biasY)
    fan_in = I * J          # torch fan-in/out convention for 3-D tensors
    fan_out = nOut * J
    bound = math.sqrt(6.0 / (fan_in + fan_out))
    return jax.random.uniform(key, (nOut, I, J), jnp.float32, -bound, bound)


def biaffine_reference(x, y, weight, biasX=True, biasY=True):
    if biasX:
        x = jnp.concatenate([x, jnp.ones_like(x[..., :1])], axis=-1)
    if biasY:
        y = jnp.concatenate([y, jnp.ones_like(y[..., :1])], axis=-1)
    s = jnp.einsum('bxi,oij,byj->boxy', x, weight, y,
                   precision=jax.lax.Precision.HIGHEST)
    if weight.shape[0] == 1:
        s = s[:, 0]
    return s


if __name__ == "__main__":
    key = jax.random.PRNGKey(0)
    kx, ky, kw = jax.random.split(key, 3)

    # Case 1: multi-channel, multi-tile (channel grouping + xW scratch reuse across Y tiles).
    B, X, Y, nIn, nOut = 2, 256, 256, 64, 2
    x = jax.random.normal(kx, (B, X, nIn), jnp.float32)
    y = jax.random.normal(ky, (B, Y, nIn), jnp.float32)
    w = init_biaffine_weight(kw, nIn, nOut, biasX=True, biasY=True)
    out = jax.block_until_ready(
        biaffine_forward(x, y, w, biasX=True, biasY=True, block_x=128, block_y=128))
    ref = biaffine_reference(x, y, w, biasX=True, biasY=True)
    assert out.shape == ref.shape, (out.shape, ref.shape)
    err = float(jnp.max(jnp.abs(out - ref)))
    assert jnp.allclose(out, ref, atol=2e-3, rtol=2e-3), err

    # Case 2: nOut == 1 squeeze, biasY=False, non-aligned X/Y exercising the pad+slice path.
    x2 = jax.random.normal(kx, (2, 123, 32), jnp.float32)
    y2 = jax.random.normal(ky, (2, 100, 32), jnp.float32)
    w2 = init_biaffine_weight(kw, 32, 1, biasX=True, biasY=False)
    out2 = jax.block_until_ready(
        biaffine_forward(x2, y2, w2, biasX=True, biasY=False))
    ref2 = biaffine_reference(x2, y2, w2, biasX=True, biasY=False)
    assert out2.shape == ref2.shape, (out2.shape, ref2.shape)
    err2 = float(jnp.max(jnp.abs(out2 - ref2)))
    assert jnp.allclose(out2, ref2, atol=2e-3, rtol=2e-3), err2

    # Case 3: bf16 compute + bf16 output path (vs f32 reference on bf16-rounded inputs).
    xb = x.astype(jnp.bfloat16).astype(jnp.float32)
    yb = y.astype(jnp.bfloat16).astype(jnp.float32)
    wb = w.astype(jnp.bfloat16).astype(jnp.float32)
    out3 = jax.block_until_ready(
        biaffine_forward(x, y, w, biasX=True, biasY=True,
                         compute_dtype=jnp.bfloat16, out_dtype=jnp.bfloat16))
    ref3 = biaffine_reference(xb, yb, wb, biasX=True, biasY=True)
    assert out3.shape == ref3.shape, (out3.shape, ref3.shape)
    err3 = float(jnp.max(jnp.abs(out3.astype(jnp.float32) - ref3)))
    scale = float(jnp.max(jnp.abs(ref3)))
    assert err3 <= 0.05 * scale + 1e-2, (err3, scale)

    print("KERNEL_OK")
</pallas_src>

<mosaic_0001>
module attributes {stable_mosaic.version = 11 : i64} {
  func.func @_biaffine_kernel(%arg0: i32, %arg1: i32, %arg2: i32, %arg3: i32, %arg4: memref<1x128x64xf32, #tpu.memory_space<vmem>>, %arg5: memref<2x65x65xf32, #tpu.memory_space<vmem>>, %arg6: memref<1x64x128xf32, #tpu.memory_space<vmem>>, %arg7: memref<1x2x128x128xf32, #tpu.memory_space<vmem>>, %arg8: memref<256x64xf32, #tpu.memory_space<vmem>>, %arg9: memref<256x1xf32, #tpu.memory_space<vmem>>) attributes {dimension_semantics = [#tpu.dimension_semantics<parallel>, #tpu.dimension_semantics<parallel>, #tpu.dimension_semantics<parallel>, #tpu.dimension_semantics<arbitrary>], iteration_bounds = array<i64: 1, 2, 2, 2>, scalar_prefetch = 0 : i64, scratch_operands = 2 : i64, tpu.core_type = #tpu.core_type<tc>, window_params = [{transform_indices = @transform_0, window_bounds = array<i64: 1, 128, 64>}, {transform_indices = @transform_1, window_bounds = array<i64: 2, 65, 65>}, {transform_indices = @transform_2, window_bounds = array<i64: 1, 64, 128>}, {transform_indices = @transform_3, window_bounds = array<i64: 1, 2, 128, 128>}]} {
    %c0_i32 = arith.constant 0 : i32
    %0 = arith.cmpi eq, %arg3, %c0_i32 : i32
    %1 = arith.extui %0 : i1 to i32
    %c0_i32_0 = arith.constant 0 : i32
    %2 = arith.cmpi ne, %1, %c0_i32_0 : i32
    scf.if %2 {
      %c0_11 = arith.constant 0 : index
      %c0_12 = arith.constant 0 : index
      %c0_13 = arith.constant 0 : index
      %14 = vector.load %arg4[%c0_11, %c0_12, %c0_13] : memref<1x128x64xf32, #tpu.memory_space<vmem>>, vector<1x128x64xf32>
      %15 = vector.shape_cast %14 : vector<1x128x64xf32> to vector<128x64xf32>
      %c0_14 = arith.constant 0 : index
      %c0_15 = arith.constant 0 : index
      %c0_16 = arith.constant 0 : index
      %16 = vector.load %arg5[%c0_14, %c0_15, %c0_16] : memref<2x65x65xf32, #tpu.memory_space<vmem>>, vector<1x65x65xf32>
      %17 = vector.shape_cast %16 : vector<1x65x65xf32> to vector<65x65xf32>
      %18 = vector.extract_strided_slice %17 {offsets = [0, 0], sizes = [64, 65], strides = [1, 1]} : vector<65x65xf32> to vector<64x65xf32>
      %cst_17 = arith.constant dense<0.000000e+00> : vector<128x65xf32>
      %19 = tpu.matmul %15, %18, %cst_17 {dimension_numbers = #tpu.dot_dimension_numbers<[1], [0], [0], [1], [0, 0, 1, 1], [], []>} : vector<128x64xf32>, vector<64x65xf32>, vector<128x65xf32> -> vector<128x65xf32>
      %20 = vector.extract_strided_slice %17 {offsets = [64, 0], sizes = [1, 65], strides = [1, 1]} : vector<65x65xf32> to vector<1x65xf32>
      %21 = vector.broadcast %20 : vector<1x65xf32> to vector<128x65xf32>
      %22 = arith.addf %19, %21 : vector<128x65xf32>
      %23 = vector.extract_strided_slice %22 {offsets = [0, 0], sizes = [128, 64], strides = [1, 1]} : vector<128x65xf32> to vector<128x64xf32>
      %c0_18 = arith.constant 0 : index
      %c0_19 = arith.constant 0 : index
      %24 = vector.load %arg8[%c0_18, %c0_19] : memref<256x64xf32, #tpu.memory_space<vmem>>, vector<128x64xf32>
      tpu.vector_store %arg8[%c0_18, %c0_19], %23 {strides = array<i32>} : memref<256x64xf32, #tpu.memory_space<vmem>>, vector<128x64xf32>,
      %25 = vector.extract_strided_slice %22 {offsets = [0, 64], sizes = [128, 1], strides = [1, 1]} : vector<128x65xf32> to vector<128x1xf32>
      %c0_20 = arith.constant 0 : index
      %c0_21 = arith.constant 0 : index
      %26 = vector.load %arg9[%c0_20, %c0_21] : memref<256x1xf32, #tpu.memory_space<vmem>>, vector<128x1xf32>
      tpu.vector_store %arg9[%c0_20, %c0_21], %25 {strides = array<i32>} : memref<256x1xf32, #tpu.memory_space<vmem>>, vector<128x1xf32>,
      %c1 = arith.constant 1 : index
      %c0_22 = arith.constant 0 : index
      %c0_23 = arith.constant 0 : index
      %27 = vector.load %arg5[%c1, %c0_22, %c0_23] : memref<2x65x65xf32, #tpu.memory_space<vmem>>, vector<1x65x65xf32>
      %28 = vector.shape_cast %27 : vector<1x65x65xf32> to vector<65x65xf32>
      %29 = vector.extract_strided_slice %28 {offsets = [0, 0], sizes = [64, 65], strides = [1, 1]} : vector<65x65xf32> to vector<64x65xf32>
      %cst_24 = arith.constant dense<0.000000e+00> : vector<128x65xf32>
      %30 = tpu.matmul %15, %29, %cst_24 {dimension_numbers = #tpu.dot_dimension_numbers<[1], [0], [0], [1], [0, 0, 1, 1], [], []>} : vector<128x64xf32>, vector<64x65xf32>, vector<128x65xf32> -> vector<128x65xf32>
      %31 = vector.extract_strided_slice %28 {offsets = [64, 0], sizes = [1, 65], strides = [1, 1]} : vector<65x65xf32> to vector<1x65xf32>
      %32 = vector.broadcast %31 : vector<1x65xf32> to vector<128x65xf32>
      %33 = arith.addf %30, %32 : vector<128x65xf32>
      %34 = vector.extract_strided_slice %33 {offsets = [0, 0], sizes = [128, 64], strides = [1, 1]} : vector<128x65xf32> to vector<128x64xf32>
      %c128 = arith.constant 128 : index
      %c0_25 = arith.constant 0 : index
      %35 = vector.load %arg8[%c128, %c0_25] : memref<256x64xf32, #tpu.memory_space<vmem>>, vector<128x64xf32>
      tpu.vector_store %arg8[%c128, %c0_25], %34 {strides = array<i32>} : memref<256x64xf32, #tpu.memory_space<vmem>>, vector<128x64xf32>,
      %36 = vector.extract_strided_slice %33 {offsets = [0, 64], sizes = [128, 1], strides = [1, 1]} : vector<128x65xf32> to vector<128x1xf32>
      %c128_26 = arith.constant 128 : index
      %c0_27 = arith.constant 0 : index
      %37 = vector.load %arg9[%c128_26, %c0_27] : memref<256x1xf32, #tpu.memory_space<vmem>>, vector<128x1xf32>
      tpu.vector_store %arg9[%c128_26, %c0_27], %36 {strides = array<i32>} : memref<256x1xf32, #tpu.memory_space<vmem>>, vector<128x1xf32>,
    } else {
    }
    %c0 = arith.constant 0 : index
    %c0_1 = arith.constant 0 : index
    %3 = vector.load %arg8[%c0, %c0_1] : memref<256x64xf32, #tpu.memory_space<vmem>>, vector<256x64xf32>
    %c0_2 = arith.constant 0 : index
    %c0_3 = arith.constant 0 : index
    %c0_4 = arith.constant 0 : index
    %4 = vector.load %arg6[%c0_2, %c0_3, %c0_4] : memref<1x64x128xf32, #tpu.memory_space<vmem>>, vector<1x64x128xf32>
    %5 = vector.shape_cast %4 : vector<1x64x128xf32> to vector<64x128xf32>
    %cst = arith.constant dense<0.000000e+00> : vector<256x128xf32>
    %6 = tpu.matmul %3, %5, %cst {dimension_numbers = #tpu.dot_dimension_numbers<[1], [0], [0], [1], [0, 0, 1, 1], [], []>} : vector<256x64xf32>, vector<64x128xf32>, vector<256x128xf32> -> vector<256x128xf32>
    %c0_5 = arith.constant 0 : index
    %c0_6 = arith.constant 0 : index
    %7 = vector.load %arg9[%c0_5, %c0_6] : memref<256x1xf32, #tpu.memory_space<vmem>>, vector<256x1xf32>
    %8 = vector.broadcast %7 : vector<256x1xf32> to vector<256x128xf32>
    %9 = arith.addf %6, %8 : vector<256x128xf32>
    %10 = vector.shape_cast %9 : vector<256x128xf32> to vector<2x128x128xf32>
    %c0_7 = arith.constant 0 : index
    %c0_8 = arith.constant 0 : index
    %c0_9 = arith.constant 0 : index
    %c0_10 = arith.constant 0 : index
    %11 = vector.load %arg7[%c0_7, %c0_8, %c0_9, %c0_10] : memref<1x2x128x128xf32, #tpu.memory_space<vmem>>, vector<1x2x128x128xf32>
    %12 = vector.shape_cast %11 : vector<1x2x128x128xf32> to vector<2x128x128xf32>
    %13 = vector.shape_cast %10 : vector<2x128x128xf32> to vector<1x2x128x128xf32>
    tpu.vector_store %arg7[%c0_7, %c0_8, %c0_9, %c0_10], %13 {strides = array<i32>} : memref<1x2x128x128xf32, #tpu.memory_space<vmem>>, vector<1x2x128x128xf32>,
    return
  }
  func.func @transform_0(%arg0: i32, %arg1: i32, %arg2: i32, %arg3: i32) -> (i32, i32, i32) {
    %c0_i32 = arith.constant 0 : i32
    %c0_i32_0 = arith.constant 0 : i32
    return %arg1, %arg2, %c0_i32 : i32, i32, i32
  }
  func.func @transform_1(%arg0: i32, %arg1: i32, %arg2: i32, %arg3: i32) -> (i32, i32, i32) {
    %c0_i32 = arith.constant 0 : i32
    %c0_i32_0 = arith.constant 0 : i32
    %c0_i32_1 = arith.constant 0 : i32
    return %arg0, %c0_i32, %c0_i32_0 : i32, i32, i32
  }
  func.func @transform_2(%arg0: i32, %arg1: i32, %arg2: i32, %arg3: i32) -> (i32, i32, i32) {
    %c0_i32 = arith.constant 0 : i32
    %c0_i32_0 = arith.constant 0 : i32
    return %arg1, %c0_i32, %arg3 : i32, i32, i32
  }
  func.func @transform_3(%arg0: i32, %arg1: i32, %arg2: i32, %arg3: i32) -> (i32, i32, i32, i32) {
    %c0_i32 = arith.constant 0 : i32
    return %arg1, %arg0, %arg2, %arg3 : i32, i32, i32, i32
  }
}

</mosaic_0001>

<llo_original>
// kernel: tpu_custom_call.1
$region0: #{tpu_custom_call.1}
  #allocation0 [shape = 'u32[]', space=smem, size = 0x4, offset = 0x4, fixed_abs, tag = 'smem constant byte address 0x4 - core index']
  #allocation1 [shape = 'u32[144,128]{1,0:T(1,128)}', space=vmem, size = 0x12000, scoped, tag = 'internal scratch']
  #allocation2 [shape = 'f32[256,64]{1,0:T(8,128)}', space=vmem, size = 0x20000, scoped, tag = 'scratch operand']
  #allocation3 [shape = 'f32[256,1]{1,0:T(8,128)}', space=vmem, size = 0x20000, scoped, tag = 'scratch operand']
  #allocation7 [shape = 's32[]', space=sflag, size = 0x4, offset = 0, fixed_abs, tag = 'sflag constant byte address 0x0 - dummy sync flag']
  %s0 = inlined_call_operand.vmem [shape: f32[2,256,64], index: 0, kind: input, shape index: {}]
  %s1 = inlined_call_operand.vmem [shape: f32[2,65,65], index: 1, kind: input, shape index: {}]
  %s2 = inlined_call_operand.vmem [shape: f32[2,64,256], index: 2, kind: input, shape index: {}]
  %s3 = inlined_call_operand.hbm [shape: f32[2,2,256,256], index: 3, kind: output, shape index: {}]
  %s4 = sld [smem:[#allocation0]]
  $region87: #{tpu_custom_call.1} parent=0
    _
  %s6 = ssub.s32 1, %s4
  %s7 = scalar_select 0, %s6, %s4
  $region1: #{tpu_custom_call.1} parent=0
    #allocation4 [shape = 'u8[65536]{0}', space=vmem, size = 0x10000, scoped, tag = 'input window, operand 2']
    #allocation5 [shape = 'u8[262144]{0}', space=vmem, size = 0x40000, scoped, tag = 'output window, operand 0']
    #allocation6 [shape = 's32[2]{0}', space=sflag, size = 0x8, scoped, tag = 'scoped memory for tpu_custom_call.1']
    %8 = vsyncpa [#allocation6], 0
    %s9 = scalar_lea.sflag [#allocation6], 1
    %10 = vsyncpa %s9, 0
    loop: start=0, step=1, limit=10
    $region2: #{tpu_custom_call.1} parent=1 // loop_pre_header
      _
    $region3: #{tpu_custom_call.1} parent=1 // loop_header
      %s12 = sphi 0, %s16
      %p13 = scmp.ge.s32.totalorder %s12, 10
      %s19 = sphi 0, %s45
      %s20 = sphi 0, %s41
      %s21 = sphi 0, %s37
      %s22 = sphi 0, %s33
      %s23 = sphi 0, %s19
      %s24 = sphi 0, %s20
      %s25 = sphi 0, %s21
      %s26 = sphi 0, %s22
      %s27 = sphi 0, %s23
      %s28 = sphi 0, %s24
      %s29 = sphi 0, %s25
      %s30 = sphi 0, %s26
      %s50 = sphi 0, %s52
      %s53 = sphi 0, %s50
      %s54 = sphi 0, %s53
      %s70 = sphi 0, %s54
      %s76 = sphi 0, %s78
      %s79 = sphi 0, %s76
      %s80 = sphi 0, %s79
      %s96 = sphi 0, %s80
      %s104 = sphi 0, %s106
      %s107 = sphi 0, %s104
      %s108 = sphi 0, %s107
      %s124 = sphi 0, %s108
      %s136 = sphi 0, %s138
      %s139 = sphi 0, %s136
      %s140 = sphi 0, %s139
      %s156 = sphi 0, %s140
    $region4: #{tpu_custom_call.1} parent=1 // loop_header_branch
      %15 = sbr.rel (%p13) target = $region8
    $region5: #{tpu_custom_call.1} parent=1 // loop_body
      %s17 = ssub.s32 %s12, 1
      %s18 = ssub.s32 %s12, 2
      %s31 = sadd.s32 1, %s22
      %p32 = scmp.ge.s32.totalorder %s31, 2
      %s33 = scalar_select %p32, 0, %s31
      %s34 = sadd.s32 1, %s21
      %s35 = scalar_select %p32, %s34, %s21
      %p36 = scmp.ge.s32.totalorder %s35, 2
      %s37 = scalar_select %p36, 0, %s35
      %s38 = sadd.s32 1, %s20
      %s39 = scalar_select %p36, %s38, %s20
      %p40 = scmp.ge.s32.totalorder %s39, 2
      %s41 = scalar_select %p40, 0, %s39
      %s42 = sadd.s32 1, %s19
      %s43 = scalar_select %p40, %s42, %s19
      %p44 = scmp.ge.s32.totalorder %s43, 1
      %s45 = scalar_select %p44, 0, %s43
      %s46 = ssub.s32 %s20, %s41
      %s47 = ssub.s32 %s21, %s37
      %s48 = sor.u32 %s46, %s47
      %p49 = scmp.eq.s32.totalorder %s48, 0
      %s51 = sadd.s32 %s50, 1
      %s52 = scalar_select %p49, %s50, %s51
      %p55 = pneg %p49
      %p56 = scmp.eq.s32.totalorder %s12, 7
      %p57 = por %p55, %p56
      %p58 = scmp.ne.s32.totalorder %s50, %s53
      %p59 = scmp.eq.s32.totalorder %s12, 0
      %p60 = por %p58, %p59
      %p61 = scmp.ne.s32.totalorder %s50, %s53
      %p62 = scmp.eq.s32.totalorder %s17, 7
      %p63 = por %p61, %p62
      %p64 = scmp.ne.s32.totalorder %s53, %s54
      %p65 = scmp.eq.s32.totalorder %s17, 0
      %p66 = por %p64, %p65
      %p67 = scmp.ne.s32.totalorder %s53, %s54
      %p68 = scmp.eq.s32.totalorder %s18, 7
      %p69 = por %p67, %p68
      %p71 = scmp.ne.s32.totalorder %s54, %s70
      %p72 = scmp.eq.s32.totalorder %s18, 0
      %p73 = por %p71, %p72
      %s74 = ssub.s32 %s19, %s45
      %p75 = scmp.eq.s32.totalorder %s74, 0
      %s77 = sadd.s32 %s76, 1
      %s78 = scalar_select %p75, %s76, %s77
      %p81 = pneg %p75
      %p82 = scmp.eq.s32.totalorder %s12, 7
      %p83 = por %p81, %p82
      %p84 = scmp.ne.s32.totalorder %s76, %s79
      %p85 = scmp.eq.s32.totalorder %s12, 0
      %p86 = por %p84, %p85
      %p87 = scmp.ne.s32.totalorder %s76, %s79
      %p88 = scmp.eq.s32.totalorder %s17, 7
      %p89 = por %p87, %p88
      %p90 = scmp.ne.s32.totalorder %s79, %s80
      %p91 = scmp.eq.s32.totalorder %s17, 0
      %p92 = por %p90, %p91
      %p93 = scmp.ne.s32.totalorder %s79, %s80
      %p94 = scmp.eq.s32.totalorder %s18, 7
      %p95 = por %p93, %p94
      %p97 = scmp.ne.s32.totalorder %s80, %s96
      %p98 = scmp.eq.s32.totalorder %s18, 0
      %p99 = por %p97, %p98
      %s100 = ssub.s32 %s20, %s41
      %s101 = ssub.s32 %s22, %s33
      %s102 = sor.u32 %s100, %s101
      %p103 = scmp.eq.s32.totalorder %s102, 0
      %s105 = sadd.s32 %s104, 1
      %s106 = scalar_select %p103, %s104, %s105
      %p109 = pneg %p103
      %p110 = scmp.eq.s32.totalorder %s12, 7
      %p111 = por %p109, %p110
      %p112 = scmp.ne.s32.totalorder %s104, %s107
      %p113 = scmp.eq.s32.totalorder %s12, 0
      %p114 = por %p112, %p113
      %p115 = scmp.ne.s32.totalorder %s104, %s107
      %p116 = scmp.eq.s32.totalorder %s17, 7
      %p117 = por %p115, %p116
      %p118 = scmp.ne.s32.totalorder %s107, %s108
      %p119 = scmp.eq.s32.totalorder %s17, 0
      %p120 = por %p118, %p119
      %p121 = scmp.ne.s32.totalorder %s107, %s108
      %p122 = scmp.eq.s32.totalorder %s18, 7
      %p123 = por %p121, %p122
      %p125 = scmp.ne.s32.totalorder %s108, %s124
      %p126 = scmp.eq.s32.totalorder %s18, 0
      %p127 = por %p125, %p126
      %s128 = ssub.s32 %s20, %s41
      %s129 = ssub.s32 %s19, %s45
      %s130 = sor.u32 %s128, %s129
      %s131 = ssub.s32 %s21, %s37
      %s132 = sor.u32 %s130, %s131
      %s133 = ssub.s32 %s22, %s33
      %s134 = sor.u32 %s132, %s133
      %p135 = scmp.eq.s32.totalorder %s134, 0
      %s137 = sadd.s32 %s136, 1
      %s138 = scalar_select %p135, %s136, %s137
      %p141 = pneg %p135
      %p142 = scmp.eq.s32.totalorder %s12, 7
      %p143 = por %p141, %p142
      %p144 = scmp.ne.s32.totalorder %s136, %s139
      %p145 = scmp.eq.s32.totalorder %s12, 0
      %p146 = por %p144, %p145
      %p147 = scmp.ne.s32.totalorder %s136, %s139
      %p148 = scmp.eq.s32.totalorder %s17, 7
      %p149 = por %p147, %p148
      %p150 = scmp.ne.s32.totalorder %s139, %s140
      %p151 = scmp.eq.s32.totalorder %s17, 0
      %p152 = por %p150, %p151
      %p153 = scmp.ne.s32.totalorder %s139, %s140
      %p154 = scmp.eq.s32.totalorder %s18, 7
      %p155 = por %p153, %p154
      %p157 = scmp.ne.s32.totalorder %s140, %s156
      %p158 = scmp.eq.s32.totalorder %s18, 0
      %p159 = por %p157, %p158
      %p160 = scmp.le.s32.totalorder 1, %s12
      %p161 = scmp.lt.s32.totalorder %s12, 9
      %p162 = pnand %p160, %p161
      %p163 = pneg %p162
      // Predicated region
      $region9: #{tpu_custom_call.1} parent=5 // pred_check
        _
      $region10: #{tpu_custom_call.1} parent=5 // pred_check_branch
        %165 = sbr.rel (%p162) target = $region12
      $region11: #{tpu_custom_call.1} parent=5 // pred_region
        %s166 = ssub.s32 %s12, 1
        // Predicated region
        $region13: #{tpu_custom_call.1} parent=11 // pred_check
          %p167 = pneg %p92
        $region14: #{tpu_custom_call.1} parent=11 // pred_check_branch
          %169 = sbr.rel (%p167) target = $region16
        $region15: #{tpu_custom_call.1} parent=11 // pred_region
          %s170 = smul.u32 2, %s23
          %p171 = scmp.lt.s32.totalorder %s170, 1
          %s172 = scalar_select %p171, %s170, 1
          %s173 = smul.addr %s172, 9
          %s174 = smul.addr %s173, 8
          %s175 = scalar_lea.vmem %s1, %s174
          %s176 = smul.u32 2, %s23
        $region16: #{tpu_custom_call.1} parent=11 // pred_fallthru
          _
      $region12: #{tpu_custom_call.1} parent=5 // pred_fallthru
        _
      %p177 = scmp.lt.s32.totalorder %s12, 8
      // Predicated region
      $region17: #{tpu_custom_call.1} parent=5 // pred_check
        %p178 = pneg %p177
      $region18: #{tpu_custom_call.1} parent=5 // pred_check_branch
        %180 = sbr.rel (%p178) target = $region20
      $region19: #{tpu_custom_call.1} parent=5 // pred_region
        // Predicated region
        $region21: #{tpu_custom_call.1} parent=19 // pred_check
          %p181 = pneg %p60
        $region22: #{tpu_custom_call.1} parent=19 // pred_check_branch
          %183 = sbr.rel (%p181) target = $region24
        $region23: #{tpu_custom_call.1} parent=19 // pred_region
          %s184 = smul.u32 16, %s21
          %p185 = scmp.lt.s32.totalorder %s20, 1
          %s186 = scalar_select %p185, %s20, 1
          %p187 = scmp.lt.s32.totalorder %s184, 31
          %s188 = scalar_select %p187, %s184, 31
          %s189 = smul.addr %s186, 32
          %s190 = sadd.s32 %s188, %s189
          %s191 = smul.addr %s190, 8
          %s192 = scalar_lea.vmem %s0, %s191
          %s193 = smul.u32 16, %s21
        $region24: #{tpu_custom_call.1} parent=19 // pred_fallthru
          _
        // Predicated region
        $region25: #{tpu_custom_call.1} parent=19 // pred_check
          %p194 = pneg %p114
        $region26: #{tpu_custom_call.1} parent=19 // pred_check_branch
          %196 = sbr.rel (%p194) target = $region28
        $region27: #{tpu_custom_call.1} parent=19 // pred_region
          %s197 = sand.u32 %s104, 1
          %s198 = sand.u32 %s104, 1
          %s199 = smul.addr %s198, 64
          %s200 = scalar_lea.vmem [#allocation4], %s199
          %s201 = smul.addr %s20, 16
          %s202 = sadd.s32 %s22, %s201
          %s203 = smul.addr %s202, 8
          %s204 = scalar_lea.vmem %s2, %s203
          // Predicated region
          $region29: #{tpu_custom_call.1} parent=27 // pred_check
            _
          $region30: #{tpu_custom_call.1} parent=27 // pred_check_branch
            %206 = sbr.rel (0) target = $region32
          $region31: #{tpu_custom_call.1} parent=27 // pred_region
            // Predicated region
            $region33: #{tpu_custom_call.1} parent=31 // pred_check
              _
            $region34: #{tpu_custom_call.1} parent=31 // pred_check_branch
              %208 = sbr.rel (0) target = $region36
            $region35: #{tpu_custom_call.1} parent=31 // pred_region
              // Predicated region
              $region48: #{tpu_custom_call.1} parent=35 // pred_check
                _
              $region49: #{tpu_custom_call.1} parent=35 // pred_check_branch
                %238 = sbr.rel (0) target = $region51
              $region50: #{tpu_custom_call.1} parent=35 // pred_region
                loop: start=0, step=1, limit=1
                $region52: #{tpu_custom_call.1} parent=50 // loop_pre_header
                  _
                $region53: #{tpu_custom_call.1} parent=50 // loop_header
                  %s240 = sphi 0, %s244
                  %p241 = scmp.ge.s32.totalorder %s240, 1
                  %s245 = sphi %s204, %s204
                  %s246 = sphi %s200, %s200
                $region54: #{tpu_custom_call.1} parent=50 // loop_header_branch
                  %243 = sbr.rel (%p241) target = $region58
                $region55: #{tpu_custom_call.1} parent=50 // loop_body
                  %v247 = vld [vmem:[%s245] sm:$0xff]
                  %248 = vst [vmem:[%s246] sm:$0xff] %v247
                  %v249 = vld [vmem:[%s245 + $0x10] sm:$0xff]
                  %250 = vst [vmem:[%s246 + $0x8] sm:$0xff] %v249
                  %v251 = vld [vmem:[%s245 + $0x20] sm:$0xff]
                  %252 = vst [vmem:[%s246 + $0x10] sm:$0xff] %v251
                  %v253 = vld [vmem:[%s245 + $0x30] sm:$0xff]
                  %254 = vst [vmem:[%s246 + $0x18] sm:$0xff] %v253
                  %v255 = vld [vmem:[%s245 + $0x40] sm:$0xff]
                  %256 = vst [vmem:[%s246 + $0x20] sm:$0xff] %v255
                  %v257 = vld [vmem:[%s245 + $0x50] sm:$0xff]
                  %258 = vst [vmem:[%s246 + $0x28] sm:$0xff] %v257
                  %v259 = vld [vmem:[%s245 + $0x60] sm:$0xff]
                  %260 = vst [vmem:[%s246 + $0x30] sm:$0xff] %v259
                  %v261 = vld [vmem:[%s245 + $0x70] sm:$0xff]
                  %262 = vst [vmem:[%s246 + $0x38] sm:$0xff] %v261
                $region56: #{tpu_custom_call.1} parent=50 // loop_footer
                  %s244 = sadd.s32 1, %s240
                $region57: #{tpu_custom_call.1} parent=50 // loop_footer_branch
                  %239 = sbr.rel target = $region53
                $region58: #{tpu_custom_call.1} parent=50 // loop_exit
                  _
              $region51: #{tpu_custom_call.1} parent=35 // pred_fallthru
                _
              // Predicated region
              $region59: #{tpu_custom_call.1} parent=35 // pred_check
                _
              $region60: #{tpu_custom_call.1} parent=35 // pred_check_branch
                %264 = sbr.rel target = $region62
              $region61: #{tpu_custom_call.1} parent=35 // pred_region
                _
              $region62: #{tpu_custom_call.1} parent=35 // pred_fallthru
                _
            $region36: #{tpu_custom_call.1} parent=31 // pred_fallthru
              _
            // Predicated region
            $region37: #{tpu_custom_call.1} parent=31 // pred_check
              _
            $region38: #{tpu_custom_call.1} parent=31 // pred_check_branch
              %210 = sbr.rel target = $region40
            $region39: #{tpu_custom_call.1} parent=31 // pred_region
              %s212 = ssub.s32 256, 1
              loop: start=0, step=1, limit=1
              $region41: #{tpu_custom_call.1} parent=39 // loop_pre_header
                _
              $region42: #{tpu_custom_call.1} parent=39 // loop_header
                %s214 = sphi 0, %s218
                %p215 = scmp.ge.s32.totalorder %s214, 1
                %s219 = sphi %s204, %s204
                %s220 = sphi %s200, %s200
              $region43: #{tpu_custom_call.1} parent=39 // loop_header_branch
                %217 = sbr.rel (%p215) target = $region47
              $region44: #{tpu_custom_call.1} parent=39 // loop_body
                %v221 = vld [vmem:[%s219] sm:%s212]
                %222 = vst [vmem:[%s220] sm:%s212] %v221
                %v223 = vld [vmem:[%s219 + $0x10] sm:%s212]
                %224 = vst [vmem:[%s220 + $0x8] sm:%s212] %v223
                %v225 = vld [vmem:[%s219 + $0x20] sm:%s212]
                %226 = vst [vmem:[%s220 + $0x10] sm:%s212] %v225
                %v227 = vld [vmem:[%s219 + $0x30] sm:%s212]
                %228 = vst [vmem:[%s220 + $0x18] sm:%s212] %v227
                %v229 = vld [vmem:[%s219 + $0x40] sm:%s212]
                %230 = vst [vmem:[%s220 + $0x20] sm:%s212] %v229
                %v231 = vld [vmem:[%s219 + $0x50] sm:%s212]
                %232 = vst [vmem:[%s220 + $0x28] sm:%s212] %v231
                %v233 = vld [vmem:[%s219 + $0x60] sm:%s212]
                %234 = vst [vmem:[%s220 + $0x30] sm:%s212] %v233
                %v235 = vld [vmem:[%s219 + $0x70] sm:%s212]
                %236 = vst [vmem:[%s220 + $0x38] sm:%s212] %v235
              $region45: #{tpu_custom_call.1} parent=39 // loop_footer
                %s218 = sadd.s32 1, %s214
              $region46: #{tpu_custom_call.1} parent=39 // loop_footer_branch
                %213 = sbr.rel target = $region42
              $region47: #{tpu_custom_call.1} parent=39 // loop_exit
                _
            $region40: #{tpu_custom_call.1} parent=31 // pred_fallthru
              _
          $region32: #{tpu_custom_call.1} parent=27 // pred_fallthru
            _
          %265 = vnop
        $region28: #{tpu_custom_call.1} parent=19 // pred_fallthru
          _
      $region20: #{tpu_custom_call.1} parent=5 // pred_fallthru
        _
      %p266 = scmp.le.s32.totalorder 1, %s12
      %p267 = scmp.lt.s32.totalorder %s12, 9
      %p268 = pnand %p266, %p267
      %p269 = pneg %p268
      // Predicated region
      $region63: #{tpu_custom_call.1} parent=5 // pred_check
        _
      $region64: #{tpu_custom_call.1} parent=5 // pred_check_branch
        %271 = sbr.rel (%p268) target = $region66
      $region65: #{tpu_custom_call.1} parent=5 // pred_region
        %s272 = ssub.s32 %s12, 1
        %s273 = sand.u32 %s107, 1
        %s274 = sand.u32 %s107, 1
        %s275 = smul.addr %s274, 64
        %s276 = scalar_lea.vmem [#allocation4], %s275
        // Predicated region
        $region67: #{tpu_custom_call.1} parent=65 // pred_check
          %p277 = pneg %p120
        $region68: #{tpu_custom_call.1} parent=65 // pred_check_branch
          %279 = sbr.rel (%p277) target = $region70
        $region69: #{tpu_custom_call.1} parent=65 // pred_region
          _
        $region70: #{tpu_custom_call.1} parent=65 // pred_fallthru
          _
        %s280 = smul.u32 16, %s25
        %p281 = scmp.lt.s32.totalorder %s24, 1
        %s282 = scalar_select %p281, %s24, 1
        %p283 = scmp.lt.s32.totalorder %s280, 31
        %s284 = scalar_select %p283, %s280, 31
        %s285 = smul.addr %s282, 32
        %s286 = sadd.s32 %s284, %s285
        %s287 = smul.addr %s286, 8
        %s288 = scalar_lea.vmem %s0, %s287
        %p289 = pneg %p66
        %p290 = pneg %p63
        %s291 = smul.u32 2, %s23
        %p292 = scmp.lt.s32.totalorder %s291, 1
        %s293 = scalar_select %p292, %s291, 1
        %s294 = smul.addr %s293, 9
        %s295 = smul.addr %s294, 8
        %s296 = scalar_lea.vmem %s1, %s295
        %p297 = pneg %p92
        %p298 = pneg %p89
        %s299 = sand.u32 %s107, 1
        %s300 = sand.u32 %s107, 1
        %s301 = smul.addr %s300, 64
        %s302 = scalar_lea.vmem [#allocation4], %s301
        %p303 = pneg %p120
        %p304 = pneg %p117
        %p305 = pneg %p152
        %p306 = pneg %p149
        %s307 = sand.u32 %s139, 1
        %s308 = scalar_lea.sflag [#allocation6], %s307
        %s309 = sand.u32 %s139, 1
        %s310 = smul.addr %s309, 256
        %s311 = scalar_lea.vmem [#allocation5], %s310
        %s312 = smul.u32 16, %s25
        %p313 = scmp.lt.s32.totalorder %s24, 1
        %s314 = scalar_select %p313, %s24, 1
        %p315 = scmp.lt.s32.totalorder %s312, 31
        %s316 = scalar_select %p315, %s312, 31
        %s317 = smul.addr %s314, 32
        %s318 = sadd.s32 %s316, %s317
        %s319 = smul.addr %s318, 8
        %s320 = scalar_lea.vmem %s0, %s319
        %s321 = smul.u32 16, %s25
        %s322 = smul.u32 2, %s23
        %p323 = scmp.lt.s32.totalorder %s322, 1
        %s324 = scalar_select %p323, %s322, 1
        %s325 = smul.addr %s324, 9
        %s326 = smul.addr %s325, 8
        %s327 = scalar_lea.vmem %s1, %s326
        %s328 = smul.u32 2, %s23
        %s329 = smul.u32 2, %s23
        %s330 = smul.u32 16, %s25
        %p331 = scmp.eq.s32.totalorder %s26, 0
        // Predicated region
        $region71: #{tpu_custom_call.1} parent=65 // pred_check
          %p332 = pneg %p331
        $region72: #{tpu_custom_call.1} parent=65 // pred_check_branch
          %334 = sbr.rel (%p332) target = $region74
        $region73: #{tpu_custom_call.1} parent=65 // pred_region
          %v335 = vld [vmem:[%s320] sm:$0xff]
          %v336 = vld [vmem:[%s320 + $0x8] sm:$0xff]
          %v337 = vld [vmem:[%s320 + $0x10] sm:$0xff]
          %v338 = vld [vmem:[%s320 + $0x18] sm:$0xff]
          %v339 = vld [vmem:[%s320 + $0x20] sm:$0xff]
          %v340 = vld [vmem:[%s320 + $0x28] sm:$0xff]
          %v341 = vld [vmem:[%s320 + $0x30] sm:$0xff]
          %v342 = vld [vmem:[%s320 + $0x38] sm:$0xff]
          %v343 = vld [vmem:[%s320 + $0x40] sm:$0xff]
          %v344 = vld [vmem:[%s320 + $0x48] sm:$0xff]
          %v345 = vld [vmem:[%s320 + $0x50] sm:$0xff]
          %v346 = vld [vmem:[%s320 + $0x58] sm:$0xff]
          %v347 = vld [vmem:[%s320 + $0x60] sm:$0xff]
          %v348 = vld [vmem:[%s320 + $0x68] sm:$0xff]
          %v349 = vld [vmem:[%s320 + $0x70] sm:$0xff]
          %v350 = vld [vmem:[%s320 + $0x78] sm:$0xff]
          %v351 = vld [vmem:[%s327] sm:$0xff]
          %v352 = vld [vmem:[%s327 + $0x8] sm:$0xff]
          %v353 = vld [vmem:[%s327 + $0x10] sm:$0xff]
          %v354 = vld [vmem:[%s327 + $0x18] sm:$0xff]
          %v355 = vld [vmem:[%s327 + $0x20] sm:$0xff]
          %v356 = vld [vmem:[%s327 + $0x28] sm:$0xff]
          %v357 = vld [vmem:[%s327 + $0x30] sm:$0xff]
          %v358 = vld [vmem:[%s327 + $0x38] sm:$0xff]
          %v359 = vld [vmem:[%s327 + $0x40] sm:$0x1]
          %v360 = vlaneseq
          %v361 = vshrl.u32 %v360, 7
          %v362 = vsub.s32 0, %v361
          %v363 = vrot.slane %v359, %v362
          %vm364 = vcmask 523264
          %v366 = vsel %vm364, %v335, 0
          %v369 = vsel %vm364, %v336, 0
          %v372 = vsel %vm364, %v337, 0
          %v375 = vsel %vm364, %v338, 0
          %v378 = vsel %vm364, %v339, 0
          %v381 = vsel %vm364, %v340, 0
          %v384 = vsel %vm364, %v341, 0
          %v387 = vsel %vm364, %v342, 0
          %v390 = vsel %vm364, %v343, 0
          %v393 = vsel %vm364, %v344, 0
          %v396 = vsel %vm364, %v345, 0
          %v399 = vsel %vm364, %v346, 0
          %v402 = vsel %vm364, %v347, 0
          %v405 = vsel %vm364, %v348, 0
          %v408 = vsel %vm364, %v349, 0
          %v411 = vsel %vm364, %v350, 0
          %413 = vmatprep.subr.mxu0 0.0
          %414 = vmatpush1.msra.mxu0 0.0
          %415 = vmatprep.subr.mxu0 0.0
          %416 = vmatpush1.msra.mxu0 0.0
          %417 = vmatprep.subr.mxu0 0.0
          %418 = vmatpush1.msra.mxu0 0.0
          %419 = vmatprep.subr.mxu0 0.0
          %420 = vmatpush1.msra.mxu0 0.0
          %421 = vmatprep.subr.mxu0 0.0
          %422 = vmatpush1.msra.mxu0 0.0
          %423 = vmatprep.subr.mxu0 0.0
          %424 = vmatpush1.msra.mxu0 0.0
          %425 = vmatprep.subr.mxu0 0.0
          %426 = vmatpush1.msra.mxu0 0.0
          %427 = vmatprep.subr.mxu0 0.0
          %428 = vmatpush1.msra.mxu0 0.0
          %429 = vmatprep.subr.mxu0 0.0
          %430 = vmatpush1.msra.mxu0 %v358
          %431 = vmatprep.subr.mxu0 0.0
          %432 = vmatpush1.msra.mxu0 %v357
          %433 = vmatprep.subr.mxu0 0.0
          %434 = vmatpush1.msra.mxu0 %v356
          %435 = vmatprep.subr.mxu0 0.0
          %436 = vmatpush1.msra.mxu0 %v355
          %437 = vmatprep.subr.mxu0 0.0
          %438 = vmatpush1.msra.mxu0 %v354
          %439 = vmatprep.subr.mxu0 0.0
          %440 = vmatpush1.msra.mxu0 %v353
          %441 = vmatprep.subr.mxu0 0.0
          %442 = vmatpush1.msra.mxu0 %v352
          %443 = vmatprep.subr.mxu0 0.0
          %444 = vmatpush1.msra.mxu0 %v351
          %445 = vmatprep.subr.mxu0 0.0
          %446 = vmatpush2.msra.mxu0 0.0
          %447 = vmatprep.subr.mxu0 0.0
          %448 = vmatpush2.msra.mxu0 0.0
          %449 = vmatprep.subr.mxu0 0.0
          %450 = vmatpush2.msra.mxu0 0.0
          %451 = vmatprep.subr.mxu0 0.0
          %452 = vmatpush2.msra.mxu0 0.0
          %453 = vmatprep.subr.mxu0 0.0
          %454 = vmatpush2.msra.mxu0 0.0
          %455 = vmatprep.subr.mxu0 0.0
          %456 = vmatpush2.msra.mxu0 0.0
          %457 = vmatprep.subr.mxu0 0.0
          %458 = vmatpush2.msra.mxu0 0.0
          %459 = vmatprep.subr.mxu0 0.0
          %460 = vmatpush2.msra.mxu0 0.0
          %461 = vmatprep.subr.mxu0 0.0
          %462 = vmatpush2.msra.mxu0 0.0
          %463 = vmatprep.subr.mxu0 0.0
          %464 = vmatpush2.msra.mxu0 0.0
          %465 = vmatprep.subr.mxu0 0.0
          %466 = vmatpush2.msra.mxu0 0.0
          %467 = vmatprep.subr.mxu0 0.0
          %468 = vmatpush2.msra.mxu0 0.0
          %469 = vmatprep.subr.mxu0 0.0
          %470 = vmatpush2.msra.mxu0 0.0
          %471 = vmatprep.subr.mxu0 0.0
          %472 = vmatpush2.msra.mxu0 0.0
          %473 = vmatprep.subr.mxu0 0.0
          %474 = vmatpush2.msra.mxu0 0.0
          %475 = vmatprep.subr.mxu0 0.0
          %476 = vmatpush2.msra.mxu0 0.0
          %477 = vmatprep.mubr.f32.mxu0 0.0
          %478 = vmatmul.mubr.f32.gmra.mxu0 %v366
          %v479 = vpop.f32.mrf.mxu0
          %v480 = vadd.f32 %v363, %v479
          %v481 = vpop.f32.mrf.mxu0
          %482 = vmatprep.mubr.f32.mxu0 0.0
          %483 = vmatmul.mubr.f32.gmra.mxu0 %v369
          %v484 = vpop.f32.mrf.mxu0
          %v485 = vadd.f32 %v363, %v484
          %v486 = vpop.f32.mrf.mxu0
          %487 = vmatprep.mubr.f32.mxu0 0.0
          %488 = vmatmul.mubr.f32.gmra.mxu0 %v372
          %v489 = vpop.f32.mrf.mxu0
          %v490 = vadd.f32 %v363, %v489
          %v491 = vpop.f32.mrf.mxu0
          %492 = vmatprep.mubr.f32.mxu0 0.0
          %493 = vmatmul.mubr.f32.gmra.mxu0 %v375
          %v494 = vpop.f32.mrf.mxu0
          %v495 = vadd.f32 %v363, %v494
          %v496 = vpop.f32.mrf.mxu0
          %497 = vmatprep.mubr.f32.mxu0 0.0
          %498 = vmatmul.mubr.f32.gmra.mxu0 %v378
          %v499 = vpop.f32.mrf.mxu0
          %v500 = vadd.f32 %v363, %v499
          %v501 = vpop.f32.mrf.mxu0
          %502 = vmatprep.mubr.f32.mxu0 0.0
          %503 = vmatmul.mubr.f32.gmra.mxu0 %v381
          %v504 = vpop.f32.mrf.mxu0
          %v505 = vadd.f32 %v363, %v504
          %v506 = vpop.f32.mrf.mxu0
          %507 = vmatprep.mubr.f32.mxu0 0.0
          %508 = vmatmul.mubr.f32.gmra.mxu0 %v384
          %v509 = vpop.f32.mrf.mxu0
          %v510 = vadd.f32 %v363, %v509
          %v511 = vpop.f32.mrf.mxu0
          %512 = vmatprep.mubr.f32.mxu0 0.0
          %513 = vmatmul.mubr.f32.gmra.mxu0 %v387
          %v514 = vpop.f32.mrf.mxu0
          %v515 = vadd.f32 %v363, %v514
          %v516 = vpop.f32.mrf.mxu0
          %517 = vmatprep.mubr.f32.mxu0 0.0
          %518 = vmatmul.mubr.f32.gmra.mxu0 %v390
          %v519 = vpop.f32.mrf.mxu0
          %v520 = vadd.f32 %v363, %v519
          %v521 = vpop.f32.mrf.mxu0
          %522 = vmatprep.mubr.f32.mxu0 0.0
          %523 = vmatmul.mubr.f32.gmra.mxu0 %v393
          %v524 = vpop.f32.mrf.mxu0
          %v525 = vadd.f32 %v363, %v524
          %v526 = vpop.f32.mrf.mxu0
          %527 = vmatprep.mubr.f32.mxu0 0.0
          %528 = vmatmul.mubr.f32.gmra.mxu0 %v396
          %v529 = vpop.f32.mrf.mxu0
          %v530 = vadd.f32 %v363, %v529
          %v531 = vpop.f32.mrf.mxu0
          %532 = vmatprep.mubr.f32.mxu0 0.0
          %533 = vmatmul.mubr.f32.gmra.mxu0 %v399
          %v534 = vpop.f32.mrf.mxu0
          %v535 = vadd.f32 %v363, %v534
          %v536 = vpop.f32.mrf.mxu0
          %537 = vmatprep.mubr.f32.mxu0 0.0
          %538 = vmatmul.mubr.f32.gmra.mxu0 %v402
          %v539 = vpop.f32.mrf.mxu0
          %v540 = vadd.f32 %v363, %v539
          %v541 = vpop.f32.mrf.mxu0
          %542 = vmatprep.mubr.f32.mxu0 0.0
          %543 = vmatmul.mubr.f32.gmra.mxu0 %v405
          %v544 = vpop.f32.mrf.mxu0
          %v545 = vadd.f32 %v363, %v544
          %v546 = vpop.f32.mrf.mxu0
          %547 = vmatprep.mubr.f32.mxu0 0.0
          %548 = vmatmul.mubr.f32.gmra.mxu0 %v408
          %v549 = vpop.f32.mrf.mxu0
          %v550 = vadd.f32 %v363, %v549
          %v551 = vpop.f32.mrf.mxu0
          %552 = vmatprep.mubr.f32.mxu0 0.0
          %553 = vmatmul.mubr.f32.gmra.mxu0 %v411
          %v554 = vpop.f32.mrf.mxu0
          %v555 = vadd.f32 %v363, %v554
          %v556 = vpop.f32.mrf.mxu0
          %557 = vdwg.mxu0
          %558 = vst.msk [vmem:[#allocation2] sm:$0xff] %vm364, %v480
          %559 = vst.msk [vmem:[#allocation2 + $0x8] sm:$0xff] %vm364, %v485
          %560 = vst.msk [vmem:[#allocation2 + $0x10] sm:$0xff] %vm364, %v490
          %561 = vst.msk [vmem:[#allocation2 + $0x18] sm:$0xff] %vm364, %v495
          %562 = vst.msk [vmem:[#allocation2 + $0x20] sm:$0xff] %vm364, %v500
          %563 = vst.msk [vmem:[#allocation2 + $0x28] sm:$0xff] %vm364, %v505
          %564 = vst.msk [vmem:[#allocation2 + $0x30] sm:$0xff] %vm364, %v510
          %565 = vst.msk [vmem:[#allocation2 + $0x38] sm:$0xff] %vm364, %v515
          %566 = vst.msk [vmem:[#allocation2 + $0x40] sm:$0xff] %vm364, %v520
          %567 = vst.msk [vmem:[#allocation2 + $0x48] sm:$0xff] %vm364, %v525
          %568 = vst.msk [vmem:[#allocation2 + $0x50] sm:$0xff] %vm364, %v530
          %569 = vst.msk [vmem:[#allocation2 + $0x58] sm:$0xff] %vm364, %v535
          %570 = vst.msk [vmem:[#allocation2 + $0x60] sm:$0xff] %vm364, %v540
          %571 = vst.msk [vmem:[#allocation2 + $0x68] sm:$0xff] %vm364, %v545
          %572 = vst.msk [vmem:[#allocation2 + $0x70] sm:$0xff] %vm364, %v550
          %573 = vst.msk [vmem:[#allocation2 + $0x78] sm:$0xff] %vm364, %v555
          %590 = vrot.lane.b32.xlu0 %v480, 64
          %v591 = vpop.permute.xlu0 %590
          %592 = vrot.lane.b32.xlu0 %v485, 64
          %v593 = vpop.permute.xlu0 %592
          %594 = vrot.lane.b32.xlu0 %v490, 64
          %v595 = vpop.permute.xlu0 %594
          %596 = vrot.lane.b32.xlu0 %v495, 64
          %v597 = vpop.permute.xlu0 %596
          %598 = vrot.lane.b32.xlu0 %v500, 64
          %v599 = vpop.permute.xlu0 %598
          %600 = vrot.lane.b32.xlu0 %v505, 64
          %v601 = vpop.permute.xlu0 %600
          %602 = vrot.lane.b32.xlu0 %v510, 64
          %v603 = vpop.permute.xlu0 %602
          %604 = vrot.lane.b32.xlu0 %v515, 64
          %v605 = vpop.permute.xlu0 %604
          %606 = vrot.lane.b32.xlu0 %v520, 64
          %v607 = vpop.permute.xlu0 %606
          %608 = vrot.lane.b32.xlu0 %v525, 64
          %v609 = vpop.permute.xlu0 %608
          %610 = vrot.lane.b32.xlu0 %v530, 64
          %v611 = vpop.permute.xlu0 %610
          %612 = vrot.lane.b32.xlu0 %v535, 64
          %v613 = vpop.permute.xlu0 %612
          %614 = vrot.lane.b32.xlu0 %v540, 64
          %v615 = vpop.permute.xlu0 %614
          %616 = vrot.lane.b32.xlu0 %v545, 64
          %v617 = vpop.permute.xlu0 %616
          %618 = vrot.lane.b32.xlu0 %v550, 64
          %v619 = vpop.permute.xlu0 %618
          %620 = vrot.lane.b32.xlu0 %v555, 64
          %v621 = vpop.permute.xlu0 %620
          %vm638 = vcmask 7168
          %639 = vst.msk [vmem:[#allocation3] sm:$0xff] %vm638, %v591
          %640 = vst.msk [vmem:[#allocation3 + $0x8] sm:$0xff] %vm638, %v593
          %641 = vst.msk [vmem:[#allocation3 + $0x10] sm:$0xff] %vm638, %v595
          %642 = vst.msk [vmem:[#allocation3 + $0x18] sm:$0xff] %vm638, %v597
          %643 = vst.msk [vmem:[#allocation3 + $0x20] sm:$0xff] %vm638, %v599
          %644 = vst.msk [vmem:[#allocation3 + $0x28] sm:$0xff] %vm638, %v601
          %645 = vst.msk [vmem:[#allocation3 + $0x30] sm:$0xff] %vm638, %v603
          %646 = vst.msk [vmem:[#allocation3 + $0x38] sm:$0xff] %vm638, %v605
          %647 = vst.msk [vmem:[#allocation3 + $0x40] sm:$0xff] %vm638, %v607
          %648 = vst.msk [vmem:[#allocation3 + $0x48] sm:$0xff] %vm638, %v609
          %649 = vst.msk [vmem:[#allocation3 + $0x50] sm:$0xff] %vm638, %v611
          %650 = vst.msk [vmem:[#allocation3 + $0x58] sm:$0xff] %vm638, %v613
          %651 = vst.msk [vmem:[#allocation3 + $0x60] sm:$0xff] %vm638, %v615
          %652 = vst.msk [vmem:[#allocation3 + $0x68] sm:$0xff] %vm638, %v617
          %653 = vst.msk [vmem:[#allocation3 + $0x70] sm:$0xff] %vm638, %v619
          %654 = vst.msk [vmem:[#allocation3 + $0x78] sm:$0xff] %vm638, %v621
          %s655 = scalar_lea.vmem %s327, 72
          %v656 = vld [vmem:[%s655] sm:$0xff]
          %v657 = vld [vmem:[%s655 + $0x8] sm:$0xff]
          %v658 = vld [vmem:[%s655 + $0x10] sm:$0xff]
          %v659 = vld [vmem:[%s655 + $0x18] sm:$0xff]
          %v660 = vld [vmem:[%s655 + $0x20] sm:$0xff]
          %v661 = vld [vmem:[%s655 + $0x28] sm:$0xff]
          %v662 = vld [vmem:[%s655 + $0x30] sm:$0xff]
          %v663 = vld [vmem:[%s655 + $0x38] sm:$0xff]
          %v664 = vld [vmem:[%s655 + $0x40] sm:$0x1]
          %v665 = vlaneseq
          %v666 = vshrl.u32 %v665, 7
          %v667 = vsub.s32 0, %v666
          %v668 = vrot.slane %v664, %v667
          %669 = vmatprep.subr.mxu0 0.0
          %670 = vmatpush1.msra.mxu0 0.0
          %671 = vmatprep.subr.mxu0 0.0
          %672 = vmatpush1.msra.mxu0 0.0
          %673 = vmatprep.subr.mxu0 0.0
          %674 = vmatpush1.msra.mxu0 0.0
          %675 = vmatprep.subr.mxu0 0.0
          %676 = vmatpush1.msra.mxu0 0.0
          %677 = vmatprep.subr.mxu0 0.0
          %678 = vmatpush1.msra.mxu0 0.0
          %679 = vmatprep.subr.mxu0 0.0
          %680 = vmatpush1.msra.mxu0 0.0
          %681 = vmatprep.subr.mxu0 0.0
          %682 = vmatpush1.msra.mxu0 0.0
          %683 = vmatprep.subr.mxu0 0.0
          %684 = vmatpush1.msra.mxu0 0.0
          %685 = vmatprep.subr.mxu0 0.0
          %686 = vmatpush1.msra.mxu0 %v663
          %687 = vmatprep.subr.mxu0 0.0
          %688 = vmatpush1.msra.mxu0 %v662
          %689 = vmatprep.subr.mxu0 0.0
          %690 = vmatpush1.msra.mxu0 %v661
          %691 = vmatprep.subr.mxu0 0.0
          %692 = vmatpush1.msra.mxu0 %v660
          %693 = vmatprep.subr.mxu0 0.0
          %694 = vmatpush1.msra.mxu0 %v659
          %695 = vmatprep.subr.mxu0 0.0
          %696 = vmatpush1.msra.mxu0 %v658
          %697 = vmatprep.subr.mxu0 0.0
          %698 = vmatpush1.msra.mxu0 %v657
          %699 = vmatprep.subr.mxu0 0.0
          %700 = vmatpush1.msra.mxu0 %v656
          %701 = vmatprep.subr.mxu0 0.0
          %702 = vmatpush2.msra.mxu0 0.0
          %703 = vmatprep.subr.mxu0 0.0
          %704 = vmatpush2.msra.mxu0 0.0
          %705 = vmatprep.subr.mxu0 0.0
          %706 = vmatpush2.msra.mxu0 0.0
          %707 = vmatprep.subr.mxu0 0.0
          %708 = vmatpush2.msra.mxu0 0.0
          %709 = vmatprep.subr.mxu0 0.0
          %710 = vmatpush2.msra.mxu0 0.0
          %711 = vmatprep.subr.mxu0 0.0
          %712 = vmatpush2.msra.mxu0 0.0
          %713 = vmatprep.subr.mxu0 0.0
          %714 = vmatpush2.msra.mxu0 0.0
          %715 = vmatprep.subr.mxu0 0.0
          %716 = vmatpush2.msra.mxu0 0.0
          %717 = vmatprep.subr.mxu0 0.0
          %718 = vmatpush2.msra.mxu0 0.0
          %719 = vmatprep.subr.mxu0 0.0
          %720 = vmatpush2.msra.mxu0 0.0
          %721 = vmatprep.subr.mxu0 0.0
          %722 = vmatpush2.msra.mxu0 0.0
          %723 = vmatprep.subr.mxu0 0.0
          %724 = vmatpush2.msra.mxu0 0.0
          %725 = vmatprep.subr.mxu0 0.0
          %726 = vmatpush2.msra.mxu0 0.0
          %727 = vmatprep.subr.mxu0 0.0
          %728 = vmatpush2.msra.mxu0 0.0
          %729 = vmatprep.subr.mxu0 0.0
          %730 = vmatpush2.msra.mxu0 0.0
          %731 = vmatprep.subr.mxu0 0.0
          %732 = vmatpush2.msra.mxu0 0.0
          %733 = vmatprep.mubr.f32.mxu0 0.0
          %734 = vmatmul.mubr.f32.gmra.mxu0 %v366
          %v735 = vpop.f32.mrf.mxu0
          %v736 = vadd.f32 %v668, %v735
          %v737 = vpop.f32.mrf.mxu0
          %738 = vmatprep.mubr.f32.mxu0 0.0
          %739 = vmatmul.mubr.f32.gmra.mxu0 %v369
          %v740 = vpop.f32.mrf.mxu0
          %v741 = vadd.f32 %v668, %v740
          %v742 = vpop.f32.mrf.mxu0
          %743 = vmatprep.mubr.f32.mxu0 0.0
          %744 = vmatmul.mubr.f32.gmra.mxu0 %v372
          %v745 = vpop.f32.mrf.mxu0
          %v746 = vadd.f32 %v668, %v745
          %v747 = vpop.f32.mrf.mxu0
          %748 = vmatprep.mubr.f32.mxu0 0.0
          %749 = vmatmul.mubr.f32.gmra.mxu0 %v375
          %v750 = vpop.f32.mrf.mxu0
          %v751 = vadd.f32 %v668, %v750
          %v752 = vpop.f32.mrf.mxu0
          %753 = vmatprep.mubr.f32.mxu0 0.0
          %754 = vmatmul.mubr.f32.gmra.mxu0 %v378
          %v755 = vpop.f32.mrf.mxu0
          %v756 = vadd.f32 %v668, %v755
          %v757 = vpop.f32.mrf.mxu0
          %758 = vmatprep.mubr.f32.mxu0 0.0
          %759 = vmatmul.mubr.f32.gmra.mxu0 %v381
          %v760 = vpop.f32.mrf.mxu0
          %v761 = vadd.f32 %v668, %v760
          %v762 = vpop.f32.mrf.mxu0
          %763 = vmatprep.mubr.f32.mxu0 0.0
          %764 = vmatmul.mubr.f32.gmra.mxu0 %v384
          %v765 = vpop.f32.mrf.mxu0
          %v766 = vadd.f32 %v668, %v765
          %v767 = vpop.f32.mrf.mxu0
          %768 = vmatprep.mubr.f32.mxu0 0.0
          %769 = vmatmul.mubr.f32.gmra.mxu0 %v387
          %v770 = vpop.f32.mrf.mxu0
          %v771 = vadd.f32 %v668, %v770
          %v772 = vpop.f32.mrf.mxu0
          %773 = vmatprep.mubr.f32.mxu0 0.0
          %774 = vmatmul.mubr.f32.gmra.mxu0 %v390
          %v775 = vpop.f32.mrf.mxu0
          %v776 = vadd.f32 %v668, %v775
          %v777 = vpop.f32.mrf.mxu0
          %778 = vmatprep.mubr.f32.mxu0 0.0
          %779 = vmatmul.mubr.f32.gmra.mxu0 %v393
          %v780 = vpop.f32.mrf.mxu0
          %v781 = vadd.f32 %v668, %v780
          %v782 = vpop.f32.mrf.mxu0
          %783 = vmatprep.mubr.f32.mxu0 0.0
          %784 = vmatmul.mubr.f32.gmra.mxu0 %v396
          %v785 = vpop.f32.mrf.mxu0
          %v786 = vadd.f32 %v668, %v785
          %v787 = vpop.f32.mrf.mxu0
          %788 = vmatprep.mubr.f32.mxu0 0.0
          %789 = vmatmul.mubr.f32.gmra.mxu0 %v399
          %v790 = vpop.f32.mrf.mxu0
          %v791 = vadd.f32 %v668, %v790
          %v792 = vpop.f32.mrf.mxu0
          %793 = vmatprep.mubr.f32.mxu0 0.0
          %794 = vmatmul.mubr.f32.gmra.mxu0 %v402
          %v795 = vpop.f32.mrf.mxu0
          %v796 = vadd.f32 %v668, %v795
          %v797 = vpop.f32.mrf.mxu0
          %798 = vmatprep.mubr.f32.mxu0 0.0
          %799 = vmatmul.mubr.f32.gmra.mxu0 %v405
          %v800 = vpop.f32.mrf.mxu0
          %v801 = vadd.f32 %v668, %v800
          %v802 = vpop.f32.mrf.mxu0
          %803 = vmatprep.mubr.f32.mxu0 0.0
          %804 = vmatmul.mubr.f32.gmra.mxu0 %v408
          %v805 = vpop.f32.mrf.mxu0
          %v806 = vadd.f32 %v668, %v805
          %v807 = vpop.f32.mrf.mxu0
          %808 = vmatprep.mubr.f32.mxu0 0.0
          %809 = vmatmul.mubr.f32.gmra.mxu0 %v411
          %v810 = vpop.f32.mrf.mxu0
          %v811 = vadd.f32 %v668, %v810
          %v812 = vpop.f32.mrf.mxu0
          %813 = vdwg.mxu0
          %814 = vst.msk [vmem:[#allocation2 + $0x80] sm:$0xff] %vm364, %v736
          %815 = vst.msk [vmem:[#allocation2 + $0x88] sm:$0xff] %vm364, %v741
          %816 = vst.msk [vmem:[#allocation2 + $0x90] sm:$0xff] %vm364, %v746
          %817 = vst.msk [vmem:[#allocation2 + $0x98] sm:$0xff] %vm364, %v751
          %818 = vst.msk [vmem:[#allocation2 + $0xa0] sm:$0xff] %vm364, %v756
          %819 = vst.msk [vmem:[#allocation2 + $0xa8] sm:$0xff] %vm364, %v761
          %820 = vst.msk [vmem:[#allocation2 + $0xb0] sm:$0xff] %vm364, %v766
          %821 = vst.msk [vmem:[#allocation2 + $0xb8] sm:$0xff] %vm364, %v771
          %822 = vst.msk [vmem:[#allocation2 + $0xc0] sm:$0xff] %vm364, %v776
          %823 = vst.msk [vmem:[#allocation2 + $0xc8] sm:$0xff] %vm364, %v781
          %824 = vst.msk [vmem:[#allocation2 + $0xd0] sm:$0xff] %vm364, %v786
          %825 = vst.msk [vmem:[#allocation2 + $0xd8] sm:$0xff] %vm364, %v791
          %826 = vst.msk [vmem:[#allocation2 + $0xe0] sm:$0xff] %vm364, %v796
          %827 = vst.msk [vmem:[#allocation2 + $0xe8] sm:$0xff] %vm364, %v801
          %828 = vst.msk [vmem:[#allocation2 + $0xf0] sm:$0xff] %vm364, %v806
          %829 = vst.msk [vmem:[#allocation2 + $0xf8] sm:$0xff] %vm364, %v811
          %846 = vrot.lane.b32.xlu0 %v736, 64
          %v847 = vpop.permute.xlu0 %846
          %848 = vrot.lane.b32.xlu0 %v741, 64
          %v849 = vpop.permute.xlu0 %848
          %850 = vrot.lane.b32.xlu0 %v746, 64
          %v851 = vpop.permute.xlu0 %850
          %852 = vrot.lane.b32.xlu0 %v751, 64
          %v853 = vpop.permute.xlu0 %852
          %854 = vrot.lane.b32.xlu0 %v756, 64
          %v855 = vpop.permute.xlu0 %854
          %856 = vrot.lane.b32.xlu0 %v761, 64
          %v857 = vpop.permute.xlu0 %856
          %858 = vrot.lane.b32.xlu0 %v766, 64
          %v859 = vpop.permute.xlu0 %858
          %860 = vrot.lane.b32.xlu0 %v771, 64
          %v861 = vpop.permute.xlu0 %860
          %862 = vrot.lane.b32.xlu0 %v776, 64
          %v863 = vpop.permute.xlu0 %862
          %864 = vrot.lane.b32.xlu0 %v781, 64
          %v865 = vpop.permute.xlu0 %864
          %866 = vrot.lane.b32.xlu0 %v786, 64
          %v867 = vpop.permute.xlu0 %866
          %868 = vrot.lane.b32.xlu0 %v791, 64
          %v869 = vpop.permute.xlu0 %868
          %870 = vrot.lane.b32.xlu0 %v796, 64
          %v871 = vpop.permute.xlu0 %870
          %872 = vrot.lane.b32.xlu0 %v801, 64
          %v873 = vpop.permute.xlu0 %872
          %874 = vrot.lane.b32.xlu0 %v806, 64
          %v875 = vpop.permute.xlu0 %874
          %876 = vrot.lane.b32.xlu0 %v811, 64
          %v877 = vpop.permute.xlu0 %876
          %894 = vst.msk [vmem:[#allocation3 + $0x80] sm:$0xff] %vm638, %v847
          %895 = vst.msk [vmem:[#allocation3 + $0x88] sm:$0xff] %vm638, %v849
          %896 = vst.msk [vmem:[#allocation3 + $0x90] sm:$0xff] %vm638, %v851
          %897 = vst.msk [vmem:[#allocation3 + $0x98] sm:$0xff] %vm638, %v853
          %898 = vst.msk [vmem:[#allocation3 + $0xa0] sm:$0xff] %vm638, %v855
          %899 = vst.msk [vmem:[#allocation3 + $0xa8] sm:$0xff] %vm638, %v857
          %900 = vst.msk [vmem:[#allocation3 + $0xb0] sm:$0xff] %vm638, %v859
          %901 = vst.msk [vmem:[#allocation3 + $0xb8] sm:$0xff] %vm638, %v861
          %902 = vst.msk [vmem:[#allocation3 + $0xc0] sm:$0xff] %vm638, %v863
          %903 = vst.msk [vmem:[#allocation3 + $0xc8] sm:$0xff] %vm638, %v865
          %904 = vst.msk [vmem:[#allocation3 + $0xd0] sm:$0xff] %vm638, %v867
          %905 = vst.msk [vmem:[#allocation3 + $0xd8] sm:$0xff] %vm638, %v869
          %906 = vst.msk [vmem:[#allocation3 + $0xe0] sm:$0xff] %vm638, %v871
          %907 = vst.msk [vmem:[#allocation3 + $0xe8] sm:$0xff] %vm638, %v873
          %908 = vst.msk [vmem:[#allocation3 + $0xf0] sm:$0xff] %vm638, %v875
          %909 = vst.msk [vmem:[#allocation3 + $0xf8] sm:$0xff] %vm638, %v877
        $region74: #{tpu_custom_call.1} parent=65 // pred_fallthru
          _
        %v910 = vld [vmem:[#allocation2] sm:$0xff]
        %v911 = vld [vmem:[#allocation2 + $0x8] sm:$0xff]
        %v912 = vld [vmem:[#allocation2 + $0x10] sm:$0xff]
        %v913 = vld [vmem:[#allocation2 + $0x18] sm:$0xff]
        %v914 = vld [vmem:[#allocation2 + $0x20] sm:$0xff]
        %v915 = vld [vmem:[#allocation2 + $0x28] sm:$0xff]
        %v916 = vld [vmem:[#allocation2 + $0x30] sm:$0xff]
        %v917 = vld [vmem:[#allocation2 + $0x38] sm:$0xff]
        %v918 = vld [vmem:[#allocation2 + $0x40] sm:$0xff]
        %v919 = vld [vmem:[#allocation2 + $0x48] sm:$0xff]
        %v920 = vld [vmem:[#allocation2 + $0x50] sm:$0xff]
        %v921 = vld [vmem:[#allocation2 + $0x58] sm:$0xff]
        %v922 = vld [vmem:[#allocation2 + $0x60] sm:$0xff]
        %v923 = vld [vmem:[#allocation2 + $0x68] sm:$0xff]
        %v924 = vld [vmem:[#allocation2 + $0x70] sm:$0xff]
        %v925 = vld [vmem:[#allocation2 + $0x78] sm:$0xff]
        %v926 = vld [vmem:[#allocation2 + $0x80] sm:$0xff]
        %v927 = vld [vmem:[#allocation2 + $0x88] sm:$0xff]
        %v928 = vld [vmem:[#allocation2 + $0x90] sm:$0xff]
        %v929 = vld [vmem:[#allocation2 + $0x98] sm:$0xff]
        %v930 = vld [vmem:[#allocation2 + $0xa0] sm:$0xff]
        %v931 = vld [vmem:[#allocation2 + $0xa8] sm:$0xff]
        %v932 = vld [vmem:[#allocation2 + $0xb0] sm:$0xff]
        %v933 = vld [vmem:[#allocation2 + $0xb8] sm:$0xff]
        %v934 = vld [vmem:[#allocation2 + $0xc0] sm:$0xff]
        %v935 = vld [vmem:[#allocation2 + $0xc8] sm:$0xff]
        %v936 = vld [vmem:[#allocation2 + $0xd0] sm:$0xff]
        %v937 = vld [vmem:[#allocation2 + $0xd8] sm:$0xff]
        %v938 = vld [vmem:[#allocation2 + $0xe0] sm:$0xff]
        %v939 = vld [vmem:[#allocation2 + $0xe8] sm:$0xff]
        %v940 = vld [vmem:[#allocation2 + $0xf0] sm:$0xff]
        %v941 = vld [vmem:[#allocation2 + $0xf8] sm:$0xff]
        %v942 = vld [vmem:[%s276] sm:$0xff]
        %v943 = vld [vmem:[%s276 + $0x8] sm:$0xff]
        %v944 = vld [vmem:[%s276 + $0x10] sm:$0xff]
        %v945 = vld [vmem:[%s276 + $0x18] sm:$0xff]
        %v946 = vld [vmem:[%s276 + $0x20] sm:$0xff]
        %v947 = vld [vmem:[%s276 + $0x28] sm:$0xff]
        %v948 = vld [vmem:[%s276 + $0x30] sm:$0xff]
        %v949 = vld [vmem:[%s276 + $0x38] sm:$0xff]
        %v950 = vld [vmem:[#allocation3] sm:$0xff]
        %v951 = vld [vmem:[#allocation3 + $0x8] sm:$0xff]
        %v952 = vld [vmem:[#allocation3 + $0x10] sm:$0xff]
        %v953 = vld [vmem:[#allocation3 + $0x18] sm:$0xff]
        %v954 = vld [vmem:[#allocation3 + $0x20] sm:$0xff]
        %v955 = vld [vmem:[#allocation3 + $0x28] sm:$0xff]
        %v956 = vld [vmem:[#allocation3 + $0x30] sm:$0xff]
        %v957 = vld [vmem:[#allocation3 + $0x38] sm:$0xff]
        %v958 = vld [vmem:[#allocation3 + $0x40] sm:$0xff]
        %v959 = vld [vmem:[#allocation3 + $0x48] sm:$0xff]
        %v960 = vld [vmem:[#allocation3 + $0x50] sm:$0xff]
        %v961 = vld [vmem:[#allocation3 + $0x58] sm:$0xff]
        %v962 = vld [vmem:[#allocation3 + $0x60] sm:$0xff]
        %v963 = vld [vmem:[#allocation3 + $0x68] sm:$0xff]
        %v964 = vld [vmem:[#allocation3 + $0x70] sm:$0xff]
        %v965 = vld [vmem:[#allocation3 + $0x78] sm:$0xff]
        %v966 = vld [vmem:[#allocation3 + $0x80] sm:$0xff]
        %v967 = vld [vmem:[#allocation3 + $0x88] sm:$0xff]
        %v968 = vld [vmem:[#allocation3 + $0x90] sm:$0xff]
        %v969 = vld [vmem:[#allocation3 + $0x98] sm:$0xff]
        %v970 = vld [vmem:[#allocation3 + $0xa0] sm:$0xff]
        %v971 = vld [vmem:[#allocation3 + $0xa8] sm:$0xff]
        %v972 = vld [vmem:[#allocation3 + $0xb0] sm:$0xff]
        %v973 = vld [vmem:[#allocation3 + $0xb8] sm:$0xff]
        %v974 = vld [vmem:[#allocation3 + $0xc0] sm:$0xff]
        %v975 = vld [vmem:[#allocation3 + $0xc8] sm:$0xff]
        %v976 = vld [vmem:[#allocation3 + $0xd0] sm:$0xff]
        %v977 = vld [vmem:[#allocation3 + $0xd8] sm:$0xff]
        %v978 = vld [vmem:[#allocation3 + $0xe0] sm:$0xff]
        %v979 = vld [vmem:[#allocation3 + $0xe8] sm:$0xff]
        %v980 = vld [vmem:[#allocation3 + $0xf0] sm:$0xff]
        %v981 = vld [vmem:[#allocation3 + $0xf8] sm:$0xff]
        %983 = vset.pattern.permute.xlu0 0
        %984 = vperm.xlu0 %983, %v950
        %v985 = vpop.permute.xlu0 %984
        %988 = vset.pattern.permute.xlu0 0
        %989 = vperm.xlu0 %988, %v951
        %v990 = vpop.permute.xlu0 %989
        %993 = vset.pattern.permute.xlu0 0
        %994 = vperm.xlu0 %993, %v952
        %v995 = vpop.permute.xlu0 %994
        %998 = vset.pattern.permute.xlu0 0
        %999 = vperm.xlu0 %998, %v953
        %v1000 = vpop.permute.xlu0 %999
        %1003 = vset.pattern.permute.xlu0 0
        %1004 = vperm.xlu0 %1003, %v954
        %v1005 = vpop.permute.xlu0 %1004
        %1008 = vset.pattern.permute.xlu0 0
        %1009 = vperm.xlu0 %1008, %v955
        %v1010 = vpop.permute.xlu0 %1009
        %1013 = vset.pattern.permute.xlu0 0
        %1014 = vperm.xlu0 %1013, %v956
        %v1015 = vpop.permute.xlu0 %1014
        %1018 = vset.pattern.permute.xlu0 0
        %1019 = vperm.xlu0 %1018, %v957
        %v1020 = vpop.permute.xlu0 %1019
        %1023 = vset.pattern.permute.xlu0 0
        %1024 = vperm.xlu0 %1023, %v958
        %v1025 = vpop.permute.xlu0 %1024
        %1028 = vset.pattern.permute.xlu0 0
        %1029 = vperm.xlu0 %1028, %v959
        %v1030 = vpop.permute.xlu0 %1029
        %1033 = vset.pattern.permute.xlu0 0
        %1034 = vperm.xlu0 %1033, %v960
        %v1035 = vpop.permute.xlu0 %1034
        %1038 = vset.pattern.permute.xlu0 0
        %1039 = vperm.xlu0 %1038, %v961
        %v1040 = vpop.permute.xlu0 %1039
        %1043 = vset.pattern.permute.xlu0 0
        %1044 = vperm.xlu0 %1043, %v962
        %v1045 = vpop.permute.xlu0 %1044
        %1048 = vset.pattern.permute.xlu0 0
        %1049 = vperm.xlu0 %1048, %v963
        %v1050 = vpop.permute.xlu0 %1049
        %1053 = vset.pattern.permute.xlu0 0
        %1054 = vperm.xlu0 %1053, %v964
        %v1055 = vpop.permute.xlu0 %1054
        %1058 = vset.pattern.permute.xlu0 0
        %1059 = vperm.xlu0 %1058, %v965
        %v1060 = vpop.permute.xlu0 %1059
        %1063 = vset.pattern.permute.xlu0 0
        %1064 = vperm.xlu0 %1063, %v966
        %v1065 = vpop.permute.xlu0 %1064
        %1068 = vset.pattern.permute.xlu0 0
        %1069 = vperm.xlu0 %1068, %v967
        %v1070 = vpop.permute.xlu0 %1069
        %1073 = vset.pattern.permute.xlu0 0
        %1074 = vperm.xlu0 %1073, %v968
        %v1075 = vpop.permute.xlu0 %1074
        %1078 = vset.pattern.permute.xlu0 0
        %1079 = vperm.xlu0 %1078, %v969
        %v1080 = vpop.permute.xlu0 %1079
        %1083 = vset.pattern.permute.xlu0 0
        %1084 = vperm.xlu0 %1083, %v970
        %v1085 = vpop.permute.xlu0 %1084
        %1088 = vset.pattern.permute.xlu0 0
        %1089 = vperm.xlu0 %1088, %v971
        %v1090 = vpop.permute.xlu0 %1089
        %1093 = vset.pattern.permute.xlu0 0
        %1094 = vperm.xlu0 %1093, %v972
        %v1095 = vpop.permute.xlu0 %1094
        %1098 = vset.pattern.permute.xlu0 0
        %1099 = vperm.xlu0 %1098, %v973
        %v1100 = vpop.permute.xlu0 %1099
        %1103 = vset.pattern.permute.xlu0 0
        %1104 = vperm.xlu0 %1103, %v974
        %v1105 = vpop.permute.xlu0 %1104
        %1108 = vset.pattern.permute.xlu0 0
        %1109 = vperm.xlu0 %1108, %v975
        %v1110 = vpop.permute.xlu0 %1109
        %1113 = vset.pattern.permute.xlu0 0
        %1114 = vperm.xlu0 %1113, %v976
        %v1115 = vpop.permute.xlu0 %1114
        %1118 = vset.pattern.permute.xlu0 0
        %1119 = vperm.xlu0 %1118, %v977
        %v1120 = vpop.permute.xlu0 %1119
        %1123 = vset.pattern.permute.xlu0 0
        %1124 = vperm.xlu0 %1123, %v978
        %v1125 = vpop.permute.xlu0 %1124
        %1128 = vset.pattern.permute.xlu0 0
        %1129 = vperm.xlu0 %1128, %v979
        %v1130 = vpop.permute.xlu0 %1129
        %1133 = vset.pattern.permute.xlu0 0
        %1134 = vperm.xlu0 %1133, %v980
        %v1135 = vpop.permute.xlu0 %1134
        %1138 = vset.pattern.permute.xlu0 0
        %1139 = vperm.xlu0 %1138, %v981
        %v1140 = vpop.permute.xlu0 %1139
        %vm1142 = vcmask 523264
        %v1144 = vsel %vm1142, %v910, 0
        %v1147 = vsel %vm1142, %v911, 0
        %v1150 = vsel %vm1142, %v912, 0
        %v1153 = vsel %vm1142, %v913, 0
        %v1156 = vsel %vm1142, %v914, 0
        %v1159 = vsel %vm1142, %v915, 0
        %v1162 = vsel %vm1142, %v916, 0
        %v1165 = vsel %vm1142, %v917, 0
        %v1168 = vsel %vm1142, %v918, 0
        %v1171 = vsel %vm1142, %v919, 0
        %v1174 = vsel %vm1142, %v920, 0
        %v1177 = vsel %vm1142, %v921, 0
        %v1180 = vsel %vm1142, %v922, 0
        %v1183 = vsel %vm1142, %v923, 0
        %v1186 = vsel %vm1142, %v924, 0
        %v1189 = vsel %vm1142, %v925, 0
        %v1192 = vsel %vm1142, %v926, 0
        %v1195 = vsel %vm1142, %v927, 0
        %v1198 = vsel %vm1142, %v928, 0
        %v1201 = vsel %vm1142, %v929, 0
        %v1204 = vsel %vm1142, %v930, 0
        %v1207 = vsel %vm1142, %v931, 0
        %v1210 = vsel %vm1142, %v932, 0
        %v1213 = vsel %vm1142, %v933, 0
        %v1216 = vsel %vm1142, %v934, 0
        %v1219 = vsel %vm1142, %v935, 0
        %v1222 = vsel %vm1142, %v936, 0
        %v1225 = vsel %vm1142, %v937, 0
        %v1228 = vsel %vm1142, %v938, 0
        %v1231 = vsel %vm1142, %v939, 0
        %v1234 = vsel %vm1142, %v940, 0
        %v1237 = vsel %vm1142, %v941, 0
        %1239 = vmatprep.subr.mxu0 0.0
        %1240 = vmatpush1.msra.mxu0 0.0
        %1241 = vmatprep.subr.mxu0 0.0
        %1242 = vmatpush1.msra.mxu0 0.0
        %1243 = vmatprep.subr.mxu0 0.0
        %1244 = vmatpush1.msra.mxu0 0.0
        %1245 = vmatprep.subr.mxu0 0.0
        %1246 = vmatpush1.msra.mxu0 0.0
        %1247 = vmatprep.subr.mxu0 0.0
        %1248 = vmatpush1.msra.mxu0 0.0
        %1249 = vmatprep.subr.mxu0 0.0
        %1250 = vmatpush1.msra.mxu0 0.0
        %1251 = vmatprep.subr.mxu0 0.0
        %1252 = vmatpush1.msra.mxu0 0.0
        %1253 = vmatprep.subr.mxu0 0.0
        %1254 = vmatpush1.msra.mxu0 0.0
        %1255 = vmatprep.subr.mxu0 0.0
        %1256 = vmatpush1.msra.mxu0 %v949
        %1257 = vmatprep.subr.mxu0 0.0
        %1258 = vmatpush1.msra.mxu0 %v948
        %1259 = vmatprep.subr.mxu0 0.0
        %1260 = vmatpush1.msra.mxu0 %v947
        %1261 = vmatprep.subr.mxu0 0.0
        %1262 = vmatpush1.msra.mxu0 %v946
        %1263 = vmatprep.subr.mxu0 0.0
        %1264 = vmatpush1.msra.mxu0 %v945
        %1265 = vmatprep.subr.mxu0 0.0
        %1266 = vmatpush1.msra.mxu0 %v944
        %1267 = vmatprep.subr.mxu0 0.0
        %1268 = vmatpush1.msra.mxu0 %v943
        %1269 = vmatprep.subr.mxu0 0.0
        %1270 = vmatpush1.msra.mxu0 %v942
        %1271 = vmatprep.subr.mxu0 0.0
        %1272 = vmatpush2.msra.mxu0 0.0
        %1273 = vmatprep.subr.mxu0 0.0
        %1274 = vmatpush2.msra.mxu0 0.0
        %1275 = vmatprep.subr.mxu0 0.0
        %1276 = vmatpush2.msra.mxu0 0.0
        %1277 = vmatprep.subr.mxu0 0.0
        %1278 = vmatpush2.msra.mxu0 0.0
        %1279 = vmatprep.subr.mxu0 0.0
        %1280 = vmatpush2.msra.mxu0 0.0
        %1281 = vmatprep.subr.mxu0 0.0
        %1282 = vmatpush2.msra.mxu0 0.0
        %1283 = vmatprep.subr.mxu0 0.0
        %1284 = vmatpush2.msra.mxu0 0.0
        %1285 = vmatprep.subr.mxu0 0.0
        %1286 = vmatpush2.msra.mxu0 0.0
        %1287 = vmatprep.subr.mxu0 0.0
        %1288 = vmatpush2.msra.mxu0 0.0
        %1289 = vmatprep.subr.mxu0 0.0
        %1290 = vmatpush2.msra.mxu0 0.0
        %1291 = vmatprep.subr.mxu0 0.0
        %1292 = vmatpush2.msra.mxu0 0.0
        %1293 = vmatprep.subr.mxu0 0.0
        %1294 = vmatpush2.msra.mxu0 0.0
        %1295 = vmatprep.subr.mxu0 0.0
        %1296 = vmatpush2.msra.mxu0 0.0
        %1297 = vmatprep.subr.mxu0 0.0
        %1298 = vmatpush2.msra.mxu0 0.0
        %1299 = vmatprep.subr.mxu0 0.0
        %1300 = vmatpush2.msra.mxu0 0.0
        %1301 = vmatprep.subr.mxu0 0.0
        %1302 = vmatpush2.msra.mxu0 0.0
        %1303 = vmatprep.mubr.f32.mxu0 0.0
        %1304 = vmatmul.mubr.f32.gmra.mxu0 %v1144
        %v1305 = vpop.f32.mrf.mxu0
        %v1306 = vadd.f32 %v985, %v1305
        %v1307 = vpop.f32.mrf.mxu0
        %1308 = vmatprep.mubr.f32.mxu0 0.0
        %1309 = vmatmul.mubr.f32.gmra.mxu0 %v1147
        %v1310 = vpop.f32.mrf.mxu0
        %v1311 = vadd.f32 %v990, %v1310
        %v1312 = vpop.f32.mrf.mxu0
        %1313 = vmatprep.mubr.f32.mxu0 0.0
        %1314 = vmatmul.mubr.f32.gmra.mxu0 %v1150
        %v1315 = vpop.f32.mrf.mxu0
        %v1316 = vadd.f32 %v995, %v1315
        %v1317 = vpop.f32.mrf.mxu0
        %1318 = vmatprep.mubr.f32.mxu0 0.0
        %1319 = vmatmul.mubr.f32.gmra.mxu0 %v1153
        %v1320 = vpop.f32.mrf.mxu0
        %v1321 = vadd.f32 %v1000, %v1320
        %v1322 = vpop.f32.mrf.mxu0
        %1323 = vmatprep.mubr.f32.mxu0 0.0
        %1324 = vmatmul.mubr.f32.gmra.mxu0 %v1156
        %v1325 = vpop.f32.mrf.mxu0
        %v1326 = vadd.f32 %v1005, %v1325
        %v1327 = vpop.f32.mrf.mxu0
        %1328 = vmatprep.mubr.f32.mxu0 0.0
        %1329 = vmatmul.mubr.f32.gmra.mxu0 %v1159
        %v1330 = vpop.f32.mrf.mxu0
        %v1331 = vadd.f32 %v1010, %v1330
        %v1332 = vpop.f32.mrf.mxu0
        %1333 = vmatprep.mubr.f32.mxu0 0.0
        %1334 = vmatmul.mubr.f32.gmra.mxu0 %v1162
        %v1335 = vpop.f32.mrf.mxu0
        %v1336 = vadd.f32 %v1015, %v1335
        %v1337 = vpop.f32.mrf.mxu0
        %1338 = vmatprep.mubr.f32.mxu0 0.0
        %1339 = vmatmul.mubr.f32.gmra.mxu0 %v1165
        %v1340 = vpop.f32.mrf.mxu0
        %v1341 = vadd.f32 %v1020, %v1340
        %v1342 = vpop.f32.mrf.mxu0
        %1343 = vmatprep.mubr.f32.mxu0 0.0
        %1344 = vmatmul.mubr.f32.gmra.mxu0 %v1168
        %v1345 = vpop.f32.mrf.mxu0
        %v1346 = vadd.f32 %v1025, %v1345
        %v1347 = vpop.f32.mrf.mxu0
        %1348 = vmatprep.mubr.f32.mxu0 0.0
        %1349 = vmatmul.mubr.f32.gmra.mxu0 %v1171
        %v1350 = vpop.f32.mrf.mxu0
        %v1351 = vadd.f32 %v1030, %v1350
        %v1352 = vpop.f32.mrf.mxu0
        %1353 = vmatprep.mubr.f32.mxu0 0.0
        %1354 = vmatmul.mubr.f32.gmra.mxu0 %v1174
        %v1355 = vpop.f32.mrf.mxu0
        %v1356 = vadd.f32 %v1035, %v1355
        %v1357 = vpop.f32.mrf.mxu0
        %1358 = vmatprep.mubr.f32.mxu0 0.0
        %1359 = vmatmul.mubr.f32.gmra.mxu0 %v1177
        %v1360 = vpop.f32.mrf.mxu0
        %v1361 = vadd.f32 %v1040, %v1360
        %v1362 = vpop.f32.mrf.mxu0
        %1363 = vmatprep.mubr.f32.mxu0 0.0
        %1364 = vmatmul.mubr.f32.gmra.mxu0 %v1180
        %v1365 = vpop.f32.mrf.mxu0
        %v1366 = vadd.f32 %v1045, %v1365
        %v1367 = vpop.f32.mrf.mxu0
        %1368 = vmatprep.mubr.f32.mxu0 0.0
        %1369 = vmatmul.mubr.f32.gmra.mxu0 %v1183
        %v1370 = vpop.f32.mrf.mxu0
        %v1371 = vadd.f32 %v1050, %v1370
        %v1372 = vpop.f32.mrf.mxu0
        %1373 = vmatprep.mubr.f32.mxu0 0.0
        %1374 = vmatmul.mubr.f32.gmra.mxu0 %v1186
        %v1375 = vpop.f32.mrf.mxu0
        %v1376 = vadd.f32 %v1055, %v1375
        %v1377 = vpop.f32.mrf.mxu0
        %1378 = vmatprep.mubr.f32.mxu0 0.0
        %1379 = vmatmul.mubr.f32.gmra.mxu0 %v1189
        %v1380 = vpop.f32.mrf.mxu0
        %v1381 = vadd.f32 %v1060, %v1380
        %v1382 = vpop.f32.mrf.mxu0
        %1383 = vmatprep.mubr.f32.mxu0 0.0
        %1384 = vmatmul.mubr.f32.gmra.mxu0 %v1192
        %v1385 = vpop.f32.mrf.mxu0
        %v1386 = vadd.f32 %v1065, %v1385
        %v1387 = vpop.f32.mrf.mxu0
        %1388 = vmatprep.mubr.f32.mxu0 0.0
        %1389 = vmatmul.mubr.f32.gmra.mxu0 %v1195
        %v1390 = vpop.f32.mrf.mxu0
        %v1391 = vadd.f32 %v1070, %v1390
        %v1392 = vpop.f32.mrf.mxu0
        %1393 = vmatprep.mubr.f32.mxu0 0.0
        %1394 = vmatmul.mubr.f32.gmra.mxu0 %v1198
        %v1395 = vpop.f32.mrf.mxu0
        %v1396 = vadd.f32 %v1075, %v1395
        %v1397 = vpop.f32.mrf.mxu0
        %1398 = vmatprep.mubr.f32.mxu0 0.0
        %1399 = vmatmul.mubr.f32.gmra.mxu0 %v1201
        %v1400 = vpop.f32.mrf.mxu0
        %v1401 = vadd.f32 %v1080, %v1400
        %v1402 = vpop.f32.mrf.mxu0
        %1403 = vmatprep.mubr.f32.mxu0 0.0
        %1404 = vmatmul.mubr.f32.gmra.mxu0 %v1204
        %v1405 = vpop.f32.mrf.mxu0
        %v1406 = vadd.f32 %v1085, %v1405
        %v1407 = vpop.f32.mrf.mxu0
        %1408 = vmatprep.mubr.f32.mxu0 0.0
        %1409 = vmatmul.mubr.f32.gmra.mxu0 %v1207
        %v1410 = vpop.f32.mrf.mxu0
        %v1411 = vadd.f32 %v1090, %v1410
        %v1412 = vpop.f32.mrf.mxu0
        %1413 = vmatprep.mubr.f32.mxu0 0.0
        %1414 = vmatmul.mubr.f32.gmra.mxu0 %v1210
        %v1415 = vpop.f32.mrf.mxu0
        %v1416 = vadd.f32 %v1095, %v1415
        %v1417 = vpop.f32.mrf.mxu0
        %1418 = vmatprep.mubr.f32.mxu0 0.0
        %1419 = vmatmul.mubr.f32.gmra.mxu0 %v1213
        %v1420 = vpop.f32.mrf.mxu0
        %v1421 = vadd.f32 %v1100, %v1420
        %v1422 = vpop.f32.mrf.mxu0
        %1423 = vmatprep.mubr.f32.mxu0 0.0
        %1424 = vmatmul.mubr.f32.gmra.mxu0 %v1216
        %v1425 = vpop.f32.mrf.mxu0
        %v1426 = vadd.f32 %v1105, %v1425
        %v1427 = vpop.f32.mrf.mxu0
        %1428 = vmatprep.mubr.f32.mxu0 0.0
        %1429 = vmatmul.mubr.f32.gmra.mxu0 %v1219
        %v1430 = vpop.f32.mrf.mxu0
        %v1431 = vadd.f32 %v1110, %v1430
        %v1432 = vpop.f32.mrf.mxu0
        %1433 = vmatprep.mubr.f32.mxu0 0.0
        %1434 = vmatmul.mubr.f32.gmra.mxu0 %v1222
        %v1435 = vpop.f32.mrf.mxu0
        %v1436 = vadd.f32 %v1115, %v1435
        %v1437 = vpop.f32.mrf.mxu0
        %1438 = vmatprep.mubr.f32.mxu0 0.0
        %1439 = vmatmul.mubr.f32.gmra.mxu0 %v1225
        %v1440 = vpop.f32.mrf.mxu0
        %v1441 = vadd.f32 %v1120, %v1440
        %v1442 = vpop.f32.mrf.mxu0
        %1443 = vmatprep.mubr.f32.mxu0 0.0
        %1444 = vmatmul.mubr.f32.gmra.mxu0 %v1228
        %v1445 = vpop.f32.mrf.mxu0
        %v1446 = vadd.f32 %v1125, %v1445
        %v1447 = vpop.f32.mrf.mxu0
        %1448 = vmatprep.mubr.f32.mxu0 0.0
        %1449 = vmatmul.mubr.f32.gmra.mxu0 %v1231
        %v1450 = vpop.f32.mrf.mxu0
        %v1451 = vadd.f32 %v1130, %v1450
        %v1452 = vpop.f32.mrf.mxu0
        %1453 = vmatprep.mubr.f32.mxu0 0.0
        %1454 = vmatmul.mubr.f32.gmra.mxu0 %v1234
        %v1455 = vpop.f32.mrf.mxu0
        %v1456 = vadd.f32 %v1135, %v1455
        %v1457 = vpop.f32.mrf.mxu0
        %1458 = vmatprep.mubr.f32.mxu0 0.0
        %1459 = vmatmul.mubr.f32.gmra.mxu0 %v1237
        %v1460 = vpop.f32.mrf.mxu0
        %v1461 = vadd.f32 %v1140, %v1460
        %v1462 = vpop.f32.mrf.mxu0
        %1463 = vdwg.mxu0
        %1464 = vst [vmem:[%s311] sm:$0xff] %v1306
        %1465 = vst [vmem:[%s311 + $0x8] sm:$0xff] %v1311
        %1466 = vst [vmem:[%s311 + $0x10] sm:$0xff] %v1316
        %1467 = vst [vmem:[%s311 + $0x18] sm:$0xff] %v1321
        %1468 = vst [vmem:[%s311 + $0x20] sm:$0xff] %v1326
        %1469 = vst [vmem:[%s311 + $0x28] sm:$0xff] %v1331
        %1470 = vst [vmem:[%s311 + $0x30] sm:$0xff] %v1336
        %1471 = vst [vmem:[%s311 + $0x38] sm:$0xff] %v1341
        %1472 = vst [vmem:[%s311 + $0x40] sm:$0xff] %v1346
        %1473 = vst [vmem:[%s311 + $0x48] sm:$0xff] %v1351
        %1474 = vst [vmem:[%s311 + $0x50] sm:$0xff] %v1356
        %1475 = vst [vmem:[%s311 + $0x58] sm:$0xff] %v1361
        %1476 = vst [vmem:[%s311 + $0x60] sm:$0xff] %v1366
        %1477 = vst [vmem:[%s311 + $0x68] sm:$0xff] %v1371
        %1478 = vst [vmem:[%s311 + $0x70] sm:$0xff] %v1376
        %1479 = vst [vmem:[%s311 + $0x78] sm:$0xff] %v1381
        %1480 = vst [vmem:[%s311 + $0x80] sm:$0xff] %v1386
        %1481 = vst [vmem:[%s311 + $0x88] sm:$0xff] %v1391
        %1482 = vst [vmem:[%s311 + $0x90] sm:$0xff] %v1396
        %1483 = vst [vmem:[%s311 + $0x98] sm:$0xff] %v1401
        %1484 = vst [vmem:[%s311 + $0xa0] sm:$0xff] %v1406
        %1485 = vst [vmem:[%s311 + $0xa8] sm:$0xff] %v1411
        %1486 = vst [vmem:[%s311 + $0xb0] sm:$0xff] %v1416
        %1487 = vst [vmem:[%s311 + $0xb8] sm:$0xff] %v1421
        %1488 = vst [vmem:[%s311 + $0xc0] sm:$0xff] %v1426
        %1489 = vst [vmem:[%s311 + $0xc8] sm:$0xff] %v1431
        %1490 = vst [vmem:[%s311 + $0xd0] sm:$0xff] %v1436
        %1491 = vst [vmem:[%s311 + $0xd8] sm:$0xff] %v1441
        %1492 = vst [vmem:[%s311 + $0xe0] sm:$0xff] %v1446
        %1493 = vst [vmem:[%s311 + $0xe8] sm:$0xff] %v1451
        %1494 = vst [vmem:[%s311 + $0xf0] sm:$0xff] %v1456
        %1495 = vst [vmem:[%s311 + $0xf8] sm:$0xff] %v1461
        %s1496 = sand.u32 %s139, 1
        %s1497 = scalar_lea.sflag [#allocation6], %s1496
        %s1498 = sand.u32 %s139, 1
        %s1499 = smul.addr %s1498, 256
        %s1500 = scalar_lea.vmem [#allocation5], %s1499
        // Predicated region
        $region75: #{tpu_custom_call.1} parent=65 // pred_check
          %p1501 = pneg %p149
        $region76: #{tpu_custom_call.1} parent=65 // pred_check_branch
          %1503 = sbr.rel (%p1501) target = $region78
        $region77: #{tpu_custom_call.1} parent=65 // pred_region
          #allocation8 [shape = 'u32[6]{0}', space=smem, size = 0x18, scoped, tag = 'DMA stride descriptor']
          %s1504 = smul.u32 2, %s23
          %s1505 = smul.u32 16, %s25
          %s1507 = ssub.s32 4096, 4096
          %1508 = vsyncadd %s1497, %s1507
          %s1509 = smul.addr %s1505, 2
          %s1510 = sadd.s32 %s26, %s1509
          %s1511 = smul.addr %s1504, 64
          %s1512 = sadd.s32 %s1510, %s1511
          %s1513 = smul.addr %s24, 128
          %s1514 = sadd.s32 %s1512, %s1513
          %s1515 = smul.addr %s1514, 128
          %s1516 = scalar_lea.hbm %s3, %s1515
          %s1518 = sshll.u32 1, 14
          %s1519 = sxor.u32 4294967295, %s1518
          %s1522 = sshll.u32 7, 18
          %s1523 = sxor.u32 4294967295, %s1522
          %s1524 = sand.u32 0, %s1523
          %s1526 = sor.u32 %s1524, 0
          %s1527 = sshll.u32 %s1500, 4
          %s1528 = int_to_ptr.vmem [resolvable:$true] %s1527
          %1534 = sst [smem:[#allocation8]] 2048
          %s1535 = scalar_lea.smem [#allocation8], 1
          %1536 = sst [smem:[%s1535]] 8192
          %s1537 = scalar_lea.smem [#allocation8], 2
          %1538 = sst [smem:[%s1537]] 16
          %s1539 = scalar_lea.smem [#allocation8], 3
          %1540 = sst [smem:[%s1539]] 128
          %s1541 = scalar_lea.smem [#allocation8], 4
          %1542 = sst [smem:[%s1541]] 256
          %s1543 = scalar_lea.smem [#allocation8], 5
          %1544 = sst [smem:[%s1543]] 8
          %1546 = dma.general %s1528, 4096, %s1516, %s1497, 131072, [#allocation8], %s1526, 0
        $region78: #{tpu_custom_call.1} parent=65 // pred_fallthru
          _
      $region66: #{tpu_custom_call.1} parent=5 // pred_fallthru
        _
      %p1547 = scmp.le.s32.totalorder 2, %s12
      // Predicated region
      $region79: #{tpu_custom_call.1} parent=5 // pred_check
        %p1548 = pneg %p1547
      $region80: #{tpu_custom_call.1} parent=5 // pred_check_branch
        %1550 = sbr.rel (%p1548) target = $region82
      $region81: #{tpu_custom_call.1} parent=5 // pred_region
        %s1551 = ssub.s32 %s12, 2
        // Predicated region
        $region83: #{tpu_custom_call.1} parent=81 // pred_check
          %p1552 = pneg %p155
        $region84: #{tpu_custom_call.1} parent=81 // pred_check_branch
          %1554 = sbr.rel (%p1552) target = $region86
        $region85: #{tpu_custom_call.1} parent=81 // pred_region
          %s1555 = sand.u32 %s140, 1
          %s1556 = scalar_lea.sflag [#allocation6], %s1555
          %s1557 = sand.u32 %s140, 1
          %s1558 = smul.addr %s1557, 256
          %s1559 = scalar_lea.vmem [#allocation5], %s1558
          %1560 = dma.done %s1556, 4096
        $region86: #{tpu_custom_call.1} parent=81 // pred_fallthru
          _
      $region82: #{tpu_custom_call.1} parent=5 // pred_fallthru
        _
    $region6: #{tpu_custom_call.1} parent=1 // loop_footer
      %s16 = sadd.s32 1, %s12
    $region7: #{tpu_custom_call.1} parent=1 // loop_footer_branch
      %11 = sbr.rel target = $region3
    $region8: #{tpu_custom_call.1} parent=1 // loop_exit
      _
    %1561 = vsyncpa [#allocation6], 1
    %s1562 = scalar_lea.sflag [#allocation6], 1
    %1563 = vsyncpa %s1562, 1

</llo_original>
